<compile_context>
chip_gen: v6e
topology: v6e:2x2x1
jax: 0.10.0
libtpu: 0.0.40
codegen_flags: <defaults>
</compile_context>

<pallas_src>
import jax
import jax.numpy as jnp
from jax.experimental import pallas as pl
from jax.experimental.pallas import tpu as pltpu

HIDDEN_DIMS = (600, 400, 200)


def _round_up(x, m):
    return ((x + m - 1) // m) * m


def _tensorcore_count():
    """Best-effort TensorCore count (v7x has 2 TCs/chip). Defaults to 1."""
    try:
        info = pltpu.get_tpu_info()
        for name in ("num_tensorcores", "tensorcore_count", "num_cores",
                     "core_count"):
            n = getattr(info, name, None)
            if isinstance(n, int) and n > 0:
                return n
    except Exception:
        pass
    try:
        n = getattr(jax.devices()[0], "num_cores", None)
        if isinstance(n, int) and n > 0:
            return n
    except Exception:
        pass
    return 1


def mlp_kernel(x_ref,
               w1_ref, b1_ref,
               w2_ref, b2_ref,
               w3_ref, b3_ref,
               w4_ref, b4_ref,
               o_ref):
    """Whole forward pass for one batch tile; all four matmuls hit the MXU.

    x arrives in f32 and is cast to bf16 in-kernel; matmul inputs are bf16,
    accumulation, bias add and ReLU are f32."""
    x = x_ref[...].astype(jnp.bfloat16)                 # in-kernel cast (free VPU op)
    h = jnp.dot(x, w1_ref[...],
                preferred_element_type=jnp.float32) + b1_ref[...]
    h = jnp.maximum(h, 0.0).astype(jnp.bfloat16)        # ReLU (dropout1: identity)
    h = jnp.dot(h, w2_ref[...],
                preferred_element_type=jnp.float32) + b2_ref[...]
    h = jnp.maximum(h, 0.0).astype(jnp.bfloat16)        # ReLU (dropout2: identity)
    h = jnp.dot(h, w3_ref[...],
                preferred_element_type=jnp.float32) + b3_ref[...]
    h = jnp.maximum(h, 0.0).astype(jnp.bfloat16)        # ReLU (dropout3: identity)
    o_ref[...] = jnp.dot(h, w4_ref[...],
                         preferred_element_type=jnp.float32) + b4_ref[...]


def prepare_params(params):
    """One-time parameter preparation (call once at load time, reuse per call):
    transpose torch-layout [out, in] weights to [in, out], zero-pad hidden /
    output feature dims to lane (128) multiples, cast weights to bf16, keep
    biases in f32 with shape [1, out_p]."""
    input_dim = params["w1"].shape[1]
    output_dim = params["w4"].shape[0]
    dims = [input_dim, *HIDDEN_DIMS, output_dim]
    # Layer-1 K (input_dim) stays unpadded: a block dim equal to the full
    # array dim is legal, and padding 32->128 would 4x the layer-1 MXU work.
    pdims = [input_dim] + [_round_up(d, 128) for d in dims[1:]]

    prepared = {"pdims": tuple(pdims),
                "input_dim": input_dim,
                "output_dim": output_dim}
    weight_bytes = 0
    flops_per_row = 0
    for idx in range(1, 5):
        d_in_p, d_out_p = pdims[idx - 1], pdims[idx]
        w = jnp.transpose(params[f"w{idx}"])                    # [in, out]
        w = jnp.pad(w, ((0, d_in_p - w.shape[0]), (0, d_out_p - w.shape[1])))
        b = jnp.pad(params[f"b{idx}"],
                    (0, d_out_p - params[f"b{idx}"].shape[0]))
        prepared[f"w{idx}"] = w.astype(jnp.bfloat16)
        prepared[f"b{idx}"] = b.reshape(1, d_out_p).astype(jnp.float32)
        weight_bytes += d_in_p * d_out_p * 2 + d_out_p * 4
        flops_per_row += 2 * dims[idx - 1] * dims[idx]
    prepared["weight_bytes"] = weight_bytes
    prepared["flops_per_row"] = flops_per_row
    return prepared


def _vmem_limit_bytes(tb, pdims, weight_bytes):
    """Tile-footprint-derived scoped-VMEM request (kept < v7x's 64 MiB)."""
    d0, d1, d2, d3, d4 = pdims
    per_row = (2 * d0 * 4                 # x tile, f32, double-buffered
               + 2 * d4 * 4               # output tile, f32, double-buffered
               + (d1 + d2 + d3) * 4       # f32 intermediates
               + (d1 + d2 + d3) * 2)      # bf16 copies of intermediates
    need = 2 * weight_bytes + tb * per_row
    return int(min(60 * 1024 * 1024,
                   max(32 * 1024 * 1024, int(1.5 * need))))


def mlp_baseline_forward(x, prepared, *, batch_tile=1024):
    """x: [B, input_dim] float32. prepared: output of prepare_params().
    Returns [B, output_dim] float32."""
    d0, d1, d2, d3, d4 = prepared["pdims"]
    output_dim = prepared["output_dim"]
    B, input_dim = x.shape
    assert input_dim == d0, "x feature dim does not match prepared params"

    # Batch tiling: one big tile per grid step (overhead amortization). tb is a
    # multiple of 32 (bf16 sublane pack = 16 rows). Only split across grid
    # steps when (a) the batch exceeds batch_tile, or (b) >1 TensorCore is
    # present AND each core gets >= 256 rows of work.
    tb = min(batch_tile, _round_up(B, 32))
    num_cores = _tensorcore_count()
    if num_cores > 1 and B >= 512 and pl.cdiv(B, tb) < num_cores:
        tb = max(256, _round_up(pl.cdiv(B, num_cores), 32))
    grid = (pl.cdiv(B, tb),)   # ragged last block handled by Pallas (masked)

    xf = x.astype(jnp.float32)

    def resident(shape):
        # Constant index_map -> single-buffered; stays in VMEM across the grid.
        return pl.BlockSpec(shape, lambda i, _n=len(shape): (0,) * _n,
                            pipeline_mode=pl.Buffered(buffer_count=1))

    cost = pl.CostEstimate(
        flops=B * prepared["flops_per_row"],
        transcendentals=0,
        bytes_accessed=B * input_dim * 4 + prepared["weight_bytes"] + B * d4 * 4,
    )

    out_p = pl.pallas_call(
        mlp_kernel,
        out_shape=jax.ShapeDtypeStruct((B, d4), jnp.float32),
        grid_spec=pltpu.PrefetchScalarGridSpec(
            num_scalar_prefetch=0,
            grid=grid,
            in_specs=[
                pl.BlockSpec((tb, d0), lambda i: (i, 0)),        # x tile (f32)
                resident((d0, d1)), resident((1, d1)),
                resident((d1, d2)), resident((1, d2)),
                resident((d2, d3)), resident((1, d3)),
                resident((d3, d4)), resident((1, d4)),
            ],
            out_specs=pl.BlockSpec((tb, d4), lambda i: (i, 0)),
        ),
        compiler_params=pltpu.CompilerParams(
            dimension_semantics=("parallel",),
            vmem_limit_bytes=_vmem_limit_bytes(
                tb, prepared["pdims"], prepared["weight_bytes"])),
        cost_estimate=cost,
    )(xf,
      prepared["w1"], prepared["b1"],
      prepared["w2"], prepared["b2"],
      prepared["w3"], prepared["b3"],
      prepared["w4"], prepared["b4"])

    # Output rows are already exactly B (masked tail writes dropped); only the
    # lane-padded feature dim needs slicing.
    return out_p[:, :output_dim]


def init_params(key, input_dim, output_dim):
    """Deterministic init; mimics nn.Linear's U(-1/sqrt(fan_in), 1/sqrt(fan_in))."""
    dims = [(input_dim, 600), (600, 400), (400, 200), (200, output_dim)]
    params = {}
    for idx, (fan_in, fan_out) in enumerate(dims, start=1):
        key, kw, kb = jax.random.split(key, 3)
        bound = 1.0 / jnp.sqrt(fan_in)
        params[f"w{idx}"] = jax.random.uniform(
            kw, (fan_out, fan_in), jnp.float32, -bound, bound)   # torch layout [out, in]
        params[f"b{idx}"] = jax.random.uniform(
            kb, (fan_out,), jnp.float32, -bound, bound)
    return params


def reference_forward_bf16(x, params):
    """Pure-JAX reference matching the kernel's bf16-matmul / f32-accumulate math."""
    h = x.astype(jnp.float32)
    for idx in range(1, 5):
        w, b = params[f"w{idx}"], params[f"b{idx}"]
        h = jnp.dot(h.astype(jnp.bfloat16), w.astype(jnp.bfloat16).T,
                    preferred_element_type=jnp.float32) + b
        if idx < 4:
            h = jnp.maximum(h, 0.0)
    return h


def reference_forward_f32(x, params):
    """True f32 (PyTorch-equivalent) reference for an accuracy sanity check."""
    h = x.astype(jnp.float32)
    for idx in range(1, 5):
        w, b = params[f"w{idx}"], params[f"b{idx}"]
        h = jnp.dot(h, w.T, precision=jax.lax.Precision.HIGHEST) + b
        if idx < 4:
            h = jnp.maximum(h, 0.0)
    return h


if __name__ == "__main__":
    key = jax.random.PRNGKey(0)
    key, kx = jax.random.split(key)

    input_dim, output_dim, batch = 32, 10, 64
    params = init_params(key, input_dim, output_dim)
    prepared = prepare_params(params)      # one-time prep, reused across calls
    x = jax.random.normal(kx, (batch, input_dim), jnp.float32)

    out = mlp_baseline_forward(x, prepared)
    out = jax.block_until_ready(out)

    assert out.shape == (batch, output_dim)

    ref_bf16 = reference_forward_bf16(x, params)
    assert jnp.allclose(out, ref_bf16, atol=1e-2, rtol=1e-2), (
        "max abs diff vs bf16-matched ref = %f"
        % float(jnp.max(jnp.abs(out - ref_bf16))))

    ref_f32 = reference_forward_f32(x, params)
    assert jnp.allclose(out, ref_f32, atol=1e-1, rtol=1e-1), (
        "max abs diff vs f32 ref = %f"
        % float(jnp.max(jnp.abs(out - ref_f32))))

    print("KERNEL_OK")
</pallas_src>

<mosaic_0001>
module attributes {stable_mosaic.version = 11 : i64} {
  func.func @mlp_kernel(%arg0: i32, %arg1: memref<64x32xf32, #tpu.memory_space<vmem>>, %arg2: memref<32x640xbf16, #tpu.memory_space<vmem>>, %arg3: memref<1x640xf32, #tpu.memory_space<vmem>>, %arg4: memref<640x512xbf16, #tpu.memory_space<vmem>>, %arg5: memref<1x512xf32, #tpu.memory_space<vmem>>, %arg6: memref<512x256xbf16, #tpu.memory_space<vmem>>, %arg7: memref<1x256xf32, #tpu.memory_space<vmem>>, %arg8: memref<256x128xbf16, #tpu.memory_space<vmem>>, %arg9: memref<1x128xf32, #tpu.memory_space<vmem>>, %arg10: memref<64x128xf32, #tpu.memory_space<vmem>>) attributes {dimension_semantics = [#tpu.dimension_semantics<parallel>], iteration_bounds = array<i64: 1>, scalar_prefetch = 0 : i64, scratch_operands = 0 : i64, tpu.core_type = #tpu.core_type<tc>, window_params = [{transform_indices = @transform_0, window_bounds = array<i64: 64, 32>}, {pipeline_mode = #tpu.pipeline_mode<synchronous>, transform_indices = @transform_1, window_bounds = array<i64: 32, 640>}, {pipeline_mode = #tpu.pipeline_mode<synchronous>, transform_indices = @transform_2, window_bounds = array<i64: 1, 640>}, {pipeline_mode = #tpu.pipeline_mode<synchronous>, transform_indices = @transform_3, window_bounds = array<i64: 640, 512>}, {pipeline_mode = #tpu.pipeline_mode<synchronous>, transform_indices = @transform_4, window_bounds = array<i64: 1, 512>}, {pipeline_mode = #tpu.pipeline_mode<synchronous>, transform_indices = @transform_5, window_bounds = array<i64: 512, 256>}, {pipeline_mode = #tpu.pipeline_mode<synchronous>, transform_indices = @transform_6, window_bounds = array<i64: 1, 256>}, {pipeline_mode = #tpu.pipeline_mode<synchronous>, transform_indices = @transform_7, window_bounds = array<i64: 256, 128>}, {pipeline_mode = #tpu.pipeline_mode<synchronous>, transform_indices = @transform_8, window_bounds = array<i64: 1, 128>}, {transform_indices = @transform_9, window_bounds = array<i64: 64, 128>}]} {
    %c0 = arith.constant 0 : index
    %c0_0 = arith.constant 0 : index
    %0 = vector.load %arg1[%c0, %c0_0] : memref<64x32xf32, #tpu.memory_space<vmem>>, vector<64x32xf32>
    %1 = arith.truncf %0 : vector<64x32xf32> to vector<64x32xbf16>
    %c0_1 = arith.constant 0 : index
    %c0_2 = arith.constant 0 : index
    %2 = vector.load %arg2[%c0_1, %c0_2] : memref<32x640xbf16, #tpu.memory_space<vmem>>, vector<32x640xbf16>
    %cst = arith.constant dense<0.000000e+00> : vector<64x640xf32>
    %3 = tpu.matmul %1, %2, %cst {dimension_numbers = #tpu.dot_dimension_numbers<[1], [0], [0], [1], [0, 0, 1, 1], [], []>} : vector<64x32xbf16>, vector<32x640xbf16>, vector<64x640xf32> -> vector<64x640xf32>
    %c0_3 = arith.constant 0 : index
    %c0_4 = arith.constant 0 : index
    %4 = vector.load %arg3[%c0_3, %c0_4] : memref<1x640xf32, #tpu.memory_space<vmem>>, vector<1x640xf32>
    %5 = vector.broadcast %4 : vector<1x640xf32> to vector<64x640xf32>
    %6 = arith.addf %3, %5 : vector<64x640xf32>
    %cst_5 = arith.constant 0.000000e+00 : f32
    %7 = vector.broadcast %cst_5 : f32 to vector<64x640xf32>
    %8 = arith.maximumf %6, %7 : vector<64x640xf32>
    %9 = arith.truncf %8 : vector<64x640xf32> to vector<64x640xbf16>
    %c0_6 = arith.constant 0 : index
    %c0_7 = arith.constant 0 : index
    %10 = vector.load %arg4[%c0_6, %c0_7] : memref<640x512xbf16, #tpu.memory_space<vmem>>, vector<640x512xbf16>
    %cst_8 = arith.constant dense<0.000000e+00> : vector<64x512xf32>
    %11 = tpu.matmul %9, %10, %cst_8 {dimension_numbers = #tpu.dot_dimension_numbers<[1], [0], [0], [1], [0, 0, 1, 1], [], []>} : vector<64x640xbf16>, vector<640x512xbf16>, vector<64x512xf32> -> vector<64x512xf32>
    %c0_9 = arith.constant 0 : index
    %c0_10 = arith.constant 0 : index
    %12 = vector.load %arg5[%c0_9, %c0_10] : memref<1x512xf32, #tpu.memory_space<vmem>>, vector<1x512xf32>
    %13 = vector.broadcast %12 : vector<1x512xf32> to vector<64x512xf32>
    %14 = arith.addf %11, %13 : vector<64x512xf32>
    %cst_11 = arith.constant 0.000000e+00 : f32
    %15 = vector.broadcast %cst_11 : f32 to vector<64x512xf32>
    %16 = arith.maximumf %14, %15 : vector<64x512xf32>
    %17 = arith.truncf %16 : vector<64x512xf32> to vector<64x512xbf16>
    %c0_12 = arith.constant 0 : index
    %c0_13 = arith.constant 0 : index
    %18 = vector.load %arg6[%c0_12, %c0_13] : memref<512x256xbf16, #tpu.memory_space<vmem>>, vector<512x256xbf16>
    %cst_14 = arith.constant dense<0.000000e+00> : vector<64x256xf32>
    %19 = tpu.matmul %17, %18, %cst_14 {dimension_numbers = #tpu.dot_dimension_numbers<[1], [0], [0], [1], [0, 0, 1, 1], [], []>} : vector<64x512xbf16>, vector<512x256xbf16>, vector<64x256xf32> -> vector<64x256xf32>
    %c0_15 = arith.constant 0 : index
    %c0_16 = arith.constant 0 : index
    %20 = vector.load %arg7[%c0_15, %c0_16] : memref<1x256xf32, #tpu.memory_space<vmem>>, vector<1x256xf32>
    %21 = vector.broadcast %20 : vector<1x256xf32> to vector<64x256xf32>
    %22 = arith.addf %19, %21 : vector<64x256xf32>
    %cst_17 = arith.constant 0.000000e+00 : f32
    %23 = vector.broadcast %cst_17 : f32 to vector<64x256xf32>
    %24 = arith.maximumf %22, %23 : vector<64x256xf32>
    %25 = arith.truncf %24 : vector<64x256xf32> to vector<64x256xbf16>
    %c0_18 = arith.constant 0 : index
    %c0_19 = arith.constant 0 : index
    %26 = vector.load %arg8[%c0_18, %c0_19] : memref<256x128xbf16, #tpu.memory_space<vmem>>, vector<256x128xbf16>
    %cst_20 = arith.constant dense<0.000000e+00> : vector<64x128xf32>
    %27 = tpu.matmul %25, %26, %cst_20 {dimension_numbers = #tpu.dot_dimension_numbers<[1], [0], [0], [1], [0, 0, 1, 1], [], []>} : vector<64x256xbf16>, vector<256x128xbf16>, vector<64x128xf32> -> vector<64x128xf32>
    %c0_21 = arith.constant 0 : index
    %c0_22 = arith.constant 0 : index
    %28 = vector.load %arg9[%c0_21, %c0_22] : memref<1x128xf32, #tpu.memory_space<vmem>>, vector<1x128xf32>
    %29 = vector.broadcast %28 : vector<1x128xf32> to vector<64x128xf32>
    %30 = arith.addf %27, %29 : vector<64x128xf32>
    %c0_23 = arith.constant 0 : index
    %c0_24 = arith.constant 0 : index
    %31 = vector.load %arg10[%c0_23, %c0_24] : memref<64x128xf32, #tpu.memory_space<vmem>>, vector<64x128xf32>
    tpu.vector_store %arg10[%c0_23, %c0_24], %30 {strides = array<i32>} : memref<64x128xf32, #tpu.memory_space<vmem>>, vector<64x128xf32>,
    return
  }
  func.func @transform_0(%arg0: i32) -> (i32, i32) {
    %c0_i32 = arith.constant 0 : i32
    %c0_i32_0 = arith.constant 0 : i32
    return %arg0, %c0_i32 : i32, i32
  }
  func.func @transform_1(%arg0: i32) -> (i32, i32) {
    %c0_i32 = arith.constant 0 : i32
    %c0_i32_0 = arith.constant 0 : i32
    %c0_i32_1 = arith.constant 0 : i32
    return %c0_i32, %c0_i32_0 : i32, i32
  }
  func.func @transform_2(%arg0: i32) -> (i32, i32) {
    %c0_i32 = arith.constant 0 : i32
    %c0_i32_0 = arith.constant 0 : i32
    %c0_i32_1 = arith.constant 0 : i32
    return %c0_i32, %c0_i32_0 : i32, i32
  }
  func.func @transform_3(%arg0: i32) -> (i32, i32) {
    %c0_i32 = arith.constant 0 : i32
    %c0_i32_0 = arith.constant 0 : i32
    %c0_i32_1 = arith.constant 0 : i32
    return %c0_i32, %c0_i32_0 : i32, i32
  }
  func.func @transform_4(%arg0: i32) -> (i32, i32) {
    %c0_i32 = arith.constant 0 : i32
    %c0_i32_0 = arith.constant 0 : i32
    %c0_i32_1 = arith.constant 0 : i32
    return %c0_i32, %c0_i32_0 : i32, i32
  }
  func.func @transform_5(%arg0: i32) -> (i32, i32) {
    %c0_i32 = arith.constant 0 : i32
    %c0_i32_0 = arith.constant 0 : i32
    %c0_i32_1 = arith.constant 0 : i32
    return %c0_i32, %c0_i32_0 : i32, i32
  }
  func.func @transform_6(%arg0: i32) -> (i32, i32) {
    %c0_i32 = arith.constant 0 : i32
    %c0_i32_0 = arith.constant 0 : i32
    %c0_i32_1 = arith.constant 0 : i32
    return %c0_i32, %c0_i32_0 : i32, i32
  }
  func.func @transform_7(%arg0: i32) -> (i32, i32) {
    %c0_i32 = arith.constant 0 : i32
    %c0_i32_0 = arith.constant 0 : i32
    %c0_i32_1 = arith.constant 0 : i32
    return %c0_i32, %c0_i32_0 : i32, i32
  }
  func.func @transform_8(%arg0: i32) -> (i32, i32) {
    %c0_i32 = arith.constant 0 : i32
    %c0_i32_0 = arith.constant 0 : i32
    %c0_i32_1 = arith.constant 0 : i32
    return %c0_i32, %c0_i32_0 : i32, i32
  }
  func.func @transform_9(%arg0: i32) -> (i32, i32) {
    %c0_i32 = arith.constant 0 : i32
    %c0_i32_0 = arith.constant 0 : i32
    return %arg0, %c0_i32 : i32, i32
  }
}

</mosaic_0001>

<llo_original>
// kernel: tpu_custom_call.1
$region0: #{tpu_custom_call.1}
  #allocation0 [shape = 'u32[]', space=smem, size = 0x4, offset = 0x4, fixed_abs, tag = 'smem constant byte address 0x4 - core index']
  #allocation1 [shape = 'u32[144,128]{1,0:T(1,128)}', space=vmem, size = 0x12000, scoped, tag = 'internal scratch']
  %s0 = inlined_call_operand.vmem [shape: f32[64,32], index: 0, kind: input, shape index: {}]
  %s1 = inlined_call_operand.vmem [shape: bf16[32,640], index: 1, kind: input, shape index: {}]
  %s2 = inlined_call_operand.vmem [shape: f32[1,640], index: 2, kind: input, shape index: {}]
  %s3 = inlined_call_operand.hbm [shape: bf16[640,512], index: 3, kind: input, shape index: {}]
  %s4 = inlined_call_operand.vmem [shape: f32[1,512], index: 4, kind: input, shape index: {}]
  %s5 = inlined_call_operand.hbm [shape: bf16[512,256], index: 5, kind: input, shape index: {}]
  %s6 = inlined_call_operand.vmem [shape: f32[1,256], index: 6, kind: input, shape index: {}]
  %s7 = inlined_call_operand.hbm [shape: bf16[256,128], index: 7, kind: input, shape index: {}]
  %s8 = inlined_call_operand.vmem [shape: f32[1,128], index: 8, kind: input, shape index: {}]
  %s9 = inlined_call_operand.hbm [shape: f32[64,128], index: 9, kind: output, shape index: {}]
  %s10 = sld [smem:[#allocation0]]
  $region58: #{tpu_custom_call.1} parent=0
    _
  %s12 = ssub.s32 1, %s10
  %s13 = scalar_select 0, %s12, %s10
  $region1: #{tpu_custom_call.1} parent=0
    #allocation2 [shape = 'u8[655360]{0}', space=vmem, size = 0xa0000, scoped, tag = 'input window, operand 3, single buffered']
    #allocation3 [shape = 's32[1]{0}', space=sflag, size = 0x4, scoped, tag = 'scoped memory for tpu_custom_call.1']
    #allocation4 [shape = 's32[1]{0}', space=sflag, size = 0x4, scoped, tag = 'scoped memory for tpu_custom_call.1']
    #allocation5 [shape = 'u8[262144]{0}', space=vmem, size = 0x40000, scoped, tag = 'input window, operand 5, single buffered']
    #allocation6 [shape = 's32[1]{0}', space=sflag, size = 0x4, scoped, tag = 'scoped memory for tpu_custom_call.1']
    #allocation7 [shape = 'u8[65536]{0}', space=vmem, size = 0x10000, scoped, tag = 'input window, operand 7, single buffered']
    #allocation8 [shape = 'u8[32768]{0}', space=vmem, size = 0x8000, scoped, tag = 'output window, operand 0, single buffered']
    %14 = vsyncpa [#allocation3], 0
    %15 = vsyncpa [#allocation6], 0
    %16 = vsyncpa [#allocation4], 0
    // Predicated region
    $region2: #{tpu_custom_call.1} parent=1 // pred_check
      _
    $region3: #{tpu_custom_call.1} parent=1 // pred_check_branch
      %18 = sbr.rel (0) target = $region5
    $region4: #{tpu_custom_call.1} parent=1 // pred_region
      _
    $region5: #{tpu_custom_call.1} parent=1 // pred_fallthru
      _
    // Predicated region
    $region6: #{tpu_custom_call.1} parent=1 // pred_check
      _
    $region7: #{tpu_custom_call.1} parent=1 // pred_check_branch
      %20 = sbr.rel (0) target = $region9
    $region8: #{tpu_custom_call.1} parent=1 // pred_region
      _
    $region9: #{tpu_custom_call.1} parent=1 // pred_fallthru
      _
    // Predicated region
    $region10: #{tpu_custom_call.1} parent=1 // pred_check
      _
    $region11: #{tpu_custom_call.1} parent=1 // pred_check_branch
      %22 = sbr.rel (0) target = $region13
    $region12: #{tpu_custom_call.1} parent=1 // pred_region
      _
    $region13: #{tpu_custom_call.1} parent=1 // pred_fallthru
      _
    // Predicated region
    $region14: #{tpu_custom_call.1} parent=1 // pred_check
      _
    $region15: #{tpu_custom_call.1} parent=1 // pred_check_branch
      %24 = sbr.rel (0) target = $region17
    $region16: #{tpu_custom_call.1} parent=1 // pred_region
      %s26 = ssub.s32 20480, 20480
      %27 = vsyncadd [#allocation3], %s26
      %s28 = sshll.u32 [#allocation2], 4
      %s29 = int_to_ptr.vmem [resolvable:$true] %s28
      %34 = dma.hbm_to_vmem [thread:$0]  %s3, 20480, %s29, [#allocation3], 256, 256, 16
    $region17: #{tpu_custom_call.1} parent=1 // pred_fallthru
      _
    // Predicated region
    $region18: #{tpu_custom_call.1} parent=1 // pred_check
      _
    $region19: #{tpu_custom_call.1} parent=1 // pred_check_branch
      %36 = sbr.rel (0) target = $region21
    $region20: #{tpu_custom_call.1} parent=1 // pred_region
      _
    $region21: #{tpu_custom_call.1} parent=1 // pred_fallthru
      _
    // Predicated region
    $region22: #{tpu_custom_call.1} parent=1 // pred_check
      _
    $region23: #{tpu_custom_call.1} parent=1 // pred_check_branch
      %38 = sbr.rel (0) target = $region25
    $region24: #{tpu_custom_call.1} parent=1 // pred_region
      %s40 = ssub.s32 8192, 8192
      %41 = vsyncadd [#allocation6], %s40
      %s42 = sshll.u32 [#allocation5], 4
      %s43 = int_to_ptr.vmem [resolvable:$true] %s42
      %48 = dma.hbm_to_vmem [thread:$0]  %s5, 8192, %s43, [#allocation6], 128, 128, 8
    $region25: #{tpu_custom_call.1} parent=1 // pred_fallthru
      _
    // Predicated region
    $region26: #{tpu_custom_call.1} parent=1 // pred_check
      _
    $region27: #{tpu_custom_call.1} parent=1 // pred_check_branch
      %50 = sbr.rel (0) target = $region29
    $region28: #{tpu_custom_call.1} parent=1 // pred_region
      _
    $region29: #{tpu_custom_call.1} parent=1 // pred_fallthru
      _
    // Predicated region
    $region30: #{tpu_custom_call.1} parent=1 // pred_check
      _
    $region31: #{tpu_custom_call.1} parent=1 // pred_check_branch
      %52 = sbr.rel (0) target = $region33
    $region32: #{tpu_custom_call.1} parent=1 // pred_region
      %s54 = ssub.s32 2048, 2048
      %55 = vsyncadd [#allocation6], %s54
      %s56 = sshll.u32 [#allocation7], 4
      %s57 = int_to_ptr.vmem [resolvable:$true] %s56
      %62 = dma.hbm_to_vmem [thread:$0]  %s7, 2048, %s57, [#allocation6], 64, 64, 4
    $region33: #{tpu_custom_call.1} parent=1 // pred_fallthru
      _
    // Predicated region
    $region34: #{tpu_custom_call.1} parent=1 // pred_check
      _
    $region35: #{tpu_custom_call.1} parent=1 // pred_check_branch
      %64 = sbr.rel (0) target = $region37
    $region36: #{tpu_custom_call.1} parent=1 // pred_region
      _
    $region37: #{tpu_custom_call.1} parent=1 // pred_fallthru
      _
    // Predicated region
    $region38: #{tpu_custom_call.1} parent=1 // pred_check
      _
    $region39: #{tpu_custom_call.1} parent=1 // pred_check_branch
      %66 = sbr.rel (0) target = $region41
    $region40: #{tpu_custom_call.1} parent=1 // pred_region
      %67 = dma.done [#allocation3], 20480
    $region41: #{tpu_custom_call.1} parent=1 // pred_fallthru
      _
    // Predicated region
    $region42: #{tpu_custom_call.1} parent=1 // pred_check
      _
    $region43: #{tpu_custom_call.1} parent=1 // pred_check_branch
      %69 = sbr.rel (0) target = $region45
    $region44: #{tpu_custom_call.1} parent=1 // pred_region
      %70 = dma.done [#allocation6], 8192
    $region45: #{tpu_custom_call.1} parent=1 // pred_fallthru
      _
    // Predicated region
    $region46: #{tpu_custom_call.1} parent=1 // pred_check
      _
    $region47: #{tpu_custom_call.1} parent=1 // pred_check_branch
      %72 = sbr.rel (0) target = $region49
    $region48: #{tpu_custom_call.1} parent=1 // pred_region
      %73 = dma.done [#allocation6], 2048
    $region49: #{tpu_custom_call.1} parent=1 // pred_fallthru
      _
    %v75 = vld [vmem:[%s0] sm:$0xff]
    %v76 = vld [vmem:[%s0 + $0x8] sm:$0xff]
    %v77 = vld [vmem:[%s0 + $0x10] sm:$0xff]
    %v78 = vld [vmem:[%s0 + $0x18] sm:$0xff]
    %v79 = vld [vmem:[%s0 + $0x20] sm:$0xff]
    %v80 = vld [vmem:[%s0 + $0x28] sm:$0xff]
    %v81 = vld [vmem:[%s0 + $0x30] sm:$0xff]
    %v82 = vld [vmem:[%s0 + $0x38] sm:$0xff]
    %v83 = vpack.c.bf16 %v76, %v75
    %v84 = vpack.c.bf16 %v78, %v77
    %v85 = vpack.c.bf16 %v80, %v79
    %v86 = vpack.c.bf16 %v82, %v81
    %v87 = vld [vmem:[%s1] sm:$0xff]
    %v88 = vld [vmem:[%s1 + $0x8] sm:$0xff]
    %v89 = vld [vmem:[%s1 + $0x10] sm:$0xf]
    %v90 = vld [vmem:[%s1 + $0x14] sm:$0xff]
    %v91 = vld [vmem:[%s1 + $0x1c] sm:$0xff]
    %v92 = vld [vmem:[%s1 + $0x24] sm:$0xf]
    %v93 = vld [vmem:[%s1 + $0x28] sm:$0xff]
    %v94 = vld [vmem:[%s1 + $0x30] sm:$0xff]
    %v95 = vld [vmem:[%s1 + $0x38] sm:$0xf]
    %v96 = vld [vmem:[%s1 + $0x3c] sm:$0xff]
    %v97 = vld [vmem:[%s1 + $0x44] sm:$0xff]
    %v98 = vld [vmem:[%s1 + $0x4c] sm:$0xf]
    %v99 = vld [vmem:[%s2] sm:$0x1f]
    %v101 = vlaneseq
    %v102 = vshrl.u32 %v101, 7
    %v103 = vsub.s32 0, %v102
    %v104 = vrot.slane %v99, %v103
    %v105 = vlaneseq
    %v106 = vshrl.u32 %v105, 7
    %v107 = vsub.s32 1, %v106
    %v108 = vrot.slane %v99, %v107
    %v109 = vlaneseq
    %v110 = vshrl.u32 %v109, 7
    %v111 = vsub.s32 2, %v110
    %v112 = vrot.slane %v99, %v111
    %v113 = vlaneseq
    %v114 = vshrl.u32 %v113, 7
    %v115 = vsub.s32 3, %v114
    %v116 = vrot.slane %v99, %v115
    %v117 = vlaneseq
    %v118 = vshrl.u32 %v117, 7
    %v119 = vsub.s32 4, %v118
    %v120 = vrot.slane %v99, %v119
    %v138 = vunpack.c.l.b16 %v87
    %v139 = vunpack.c.h.b16 %v87
    %v140 = vunpack.c.l.b16 %v88
    %v141 = vunpack.c.h.b16 %v88
    %v142 = vunpack.c.l.b16 %v89
    %v143 = vunpack.c.l.b16 %v90
    %v144 = vunpack.c.h.b16 %v90
    %v145 = vunpack.c.l.b16 %v91
    %v146 = vunpack.c.h.b16 %v91
    %v147 = vunpack.c.l.b16 %v92
    %v148 = vunpack.c.l.b16 %v93
    %v149 = vunpack.c.h.b16 %v93
    %v150 = vunpack.c.l.b16 %v94
    %v151 = vunpack.c.h.b16 %v94
    %v152 = vunpack.c.l.b16 %v95
    %v153 = vunpack.c.l.b16 %v96
    %v154 = vunpack.c.h.b16 %v96
    %v155 = vunpack.c.l.b16 %v97
    %v156 = vunpack.c.h.b16 %v97
    %v157 = vunpack.c.l.b16 %v98
    %v158 = vpack.c.b16 %v143, %v138
    %v159 = vpack.c.b16 %v144, %v139
    %v160 = vpack.c.b16 %v145, %v140
    %v161 = vpack.c.b16 %v146, %v141
    %v162 = vpack.c.b16 %v147, %v142
    %v163 = vpack.c.b16 %v153, %v148
    %v164 = vpack.c.b16 %v154, %v149
    %v165 = vpack.c.b16 %v155, %v150
    %v166 = vpack.c.b16 %v156, %v151
    %v167 = vpack.c.b16 %v157, %v152
    %vm178 = vcmask 261120
    %v180 = vsel %vm178, %v83, 0
    %v183 = vsel %vm178, %v84, 0
    %v186 = vsel %vm178, %v85, 0
    %v189 = vsel %vm178, %v86, 0
    %191 = vmatprep.subr.bf16.mxu0 0
    %192 = vmatpush1.bf16.msra.mxu0 0
    %193 = vmatprep.subr.bf16.mxu0 0
    %194 = vmatpush1.bf16.msra.mxu0 0
    %195 = vmatprep.subr.bf16.mxu0 0
    %196 = vmatpush1.bf16.msra.mxu0 0
    %197 = vmatprep.subr.bf16.mxu0 0
    %198 = vmatpush1.bf16.msra.mxu0 0
    %199 = vmatprep.subr.bf16.mxu0 0
    %200 = vmatpush1.bf16.msra.mxu0 0
    %201 = vmatprep.subr.bf16.mxu0 0
    %202 = vmatpush1.bf16.msra.mxu0 0
    %203 = vmatprep.subr.bf16.mxu0 %v164
    %204 = vmatpush1.bf16.msra.mxu0 %v163
    %205 = vmatprep.subr.bf16.mxu0 %v159
    %206 = vmatpush1.bf16.msra.mxu0 %v158
    %207 = vmatprep.subr.bf16.mxu0 0
    %208 = vmatpush2.bf16.msra.mxu0 0
    %209 = vmatprep.subr.bf16.mxu0 0
    %210 = vmatpush2.bf16.msra.mxu0 0
    %211 = vmatprep.subr.bf16.mxu0 0
    %212 = vmatpush2.bf16.msra.mxu0 0
    %213 = vmatprep.subr.bf16.mxu0 0
    %214 = vmatpush2.bf16.msra.mxu0 0
    %215 = vmatprep.subr.bf16.mxu0 0
    %216 = vmatpush2.bf16.msra.mxu0 0
    %217 = vmatprep.subr.bf16.mxu0 0
    %218 = vmatpush2.bf16.msra.mxu0 0
    %219 = vmatprep.subr.bf16.mxu0 0
    %220 = vmatpush2.bf16.msra.mxu0 0
    %221 = vmatprep.subr.bf16.mxu0 0
    %222 = vmatpush2.bf16.msra.mxu0 0
    %223 = vmatprep.mubr.bf16.mxu0 0
    %224 = vmatmul.mubr.bf16.gmra.mxu0 %v180
    %v225 = vpop.f32.mrf.mxu0
    %v226 = vadd.f32 %v104, %v225
    %v227 = vpop.f32.mrf.mxu0
    %v228 = vadd.f32 %v108, %v227
    %v229 = vpop.f32.mrf.mxu0
    %v230 = vadd.f32 %v104, %v229
    %v231 = vpop.f32.mrf.mxu0
    %v232 = vadd.f32 %v108, %v231
    %233 = vmatprep.mubr.bf16.mxu0 0
    %234 = vmatmul.mubr.bf16.gmra.mxu0 %v183
    %v235 = vpop.f32.mrf.mxu0
    %v236 = vadd.f32 %v104, %v235
    %v237 = vpop.f32.mrf.mxu0
    %v238 = vadd.f32 %v108, %v237
    %v239 = vpop.f32.mrf.mxu0
    %v240 = vadd.f32 %v104, %v239
    %v241 = vpop.f32.mrf.mxu0
    %v242 = vadd.f32 %v108, %v241
    %243 = vmatprep.mubr.bf16.mxu0 0
    %244 = vmatmul.mubr.bf16.gmra.mxu0 %v186
    %v245 = vpop.f32.mrf.mxu0
    %v246 = vadd.f32 %v104, %v245
    %v247 = vpop.f32.mrf.mxu0
    %v248 = vadd.f32 %v108, %v247
    %v249 = vpop.f32.mrf.mxu0
    %v250 = vadd.f32 %v104, %v249
    %v251 = vpop.f32.mrf.mxu0
    %v252 = vadd.f32 %v108, %v251
    %253 = vmatprep.mubr.bf16.mxu0 0
    %254 = vmatmul.mubr.bf16.gmra.mxu0 %v189
    %v255 = vpop.f32.mrf.mxu0
    %v256 = vadd.f32 %v104, %v255
    %v257 = vpop.f32.mrf.mxu0
    %v258 = vadd.f32 %v108, %v257
    %v259 = vpop.f32.mrf.mxu0
    %v260 = vadd.f32 %v104, %v259
    %v261 = vpop.f32.mrf.mxu0
    %v262 = vadd.f32 %v108, %v261
    %263 = vdwg.mxu0
    %264 = vmatprep.subr.bf16.mxu0 0
    %265 = vmatpush1.bf16.msra.mxu0 0
    %266 = vmatprep.subr.bf16.mxu0 0
    %267 = vmatpush1.bf16.msra.mxu0 0
    %268 = vmatprep.subr.bf16.mxu0 0
    %269 = vmatpush1.bf16.msra.mxu0 0
    %270 = vmatprep.subr.bf16.mxu0 0
    %271 = vmatpush1.bf16.msra.mxu0 0
    %272 = vmatprep.subr.bf16.mxu0 0
    %273 = vmatpush1.bf16.msra.mxu0 0
    %274 = vmatprep.subr.bf16.mxu0 0
    %275 = vmatpush1.bf16.msra.mxu0 0
    %276 = vmatprep.subr.bf16.mxu0 %v166
    %277 = vmatpush1.bf16.msra.mxu0 %v165
    %278 = vmatprep.subr.bf16.mxu0 %v161
    %279 = vmatpush1.bf16.msra.mxu0 %v160
    %280 = vmatprep.subr.bf16.mxu0 0
    %281 = vmatpush2.bf16.msra.mxu0 0
    %282 = vmatprep.subr.bf16.mxu0 0
    %283 = vmatpush2.bf16.msra.mxu0 0
    %284 = vmatprep.subr.bf16.mxu0 0
    %285 = vmatpush2.bf16.msra.mxu0 0
    %286 = vmatprep.subr.bf16.mxu0 0
    %287 = vmatpush2.bf16.msra.mxu0 0
    %288 = vmatprep.subr.bf16.mxu0 0
    %289 = vmatpush2.bf16.msra.mxu0 0
    %290 = vmatprep.subr.bf16.mxu0 0
    %291 = vmatpush2.bf16.msra.mxu0 0
    %292 = vmatprep.subr.bf16.mxu0 0
    %293 = vmatpush2.bf16.msra.mxu0 0
    %294 = vmatprep.subr.bf16.mxu0 0
    %295 = vmatpush2.bf16.msra.mxu0 0
    %296 = vmatprep.mubr.bf16.mxu0 0
    %297 = vmatmul.mubr.bf16.gmra.mxu0 %v180
    %v298 = vpop.f32.mrf.mxu0
    %v299 = vadd.f32 %v112, %v298
    %v300 = vpop.f32.mrf.mxu0
    %v301 = vadd.f32 %v116, %v300
    %v302 = vpop.f32.mrf.mxu0
    %v303 = vadd.f32 %v112, %v302
    %v304 = vpop.f32.mrf.mxu0
    %v305 = vadd.f32 %v116, %v304
    %306 = vmatprep.mubr.bf16.mxu0 0
    %307 = vmatmul.mubr.bf16.gmra.mxu0 %v183
    %v308 = vpop.f32.mrf.mxu0
    %v309 = vadd.f32 %v112, %v308
    %v310 = vpop.f32.mrf.mxu0
    %v311 = vadd.f32 %v116, %v310
    %v312 = vpop.f32.mrf.mxu0
    %v313 = vadd.f32 %v112, %v312
    %v314 = vpop.f32.mrf.mxu0
    %v315 = vadd.f32 %v116, %v314
    %316 = vmatprep.mubr.bf16.mxu0 0
    %317 = vmatmul.mubr.bf16.gmra.mxu0 %v186
    %v318 = vpop.f32.mrf.mxu0
    %v319 = vadd.f32 %v112, %v318
    %v320 = vpop.f32.mrf.mxu0
    %v321 = vadd.f32 %v116, %v320
    %v322 = vpop.f32.mrf.mxu0
    %v323 = vadd.f32 %v112, %v322
    %v324 = vpop.f32.mrf.mxu0
    %v325 = vadd.f32 %v116, %v324
    %326 = vmatprep.mubr.bf16.mxu0 0
    %327 = vmatmul.mubr.bf16.gmra.mxu0 %v189
    %v328 = vpop.f32.mrf.mxu0
    %v329 = vadd.f32 %v112, %v328
    %v330 = vpop.f32.mrf.mxu0
    %v331 = vadd.f32 %v116, %v330
    %v332 = vpop.f32.mrf.mxu0
    %v333 = vadd.f32 %v112, %v332
    %v334 = vpop.f32.mrf.mxu0
    %v335 = vadd.f32 %v116, %v334
    %336 = vdwg.mxu0
    %337 = vmatprep.subr.bf16.mxu0 0
    %338 = vmatpush1.bf16.msra.mxu0 0
    %339 = vmatprep.subr.bf16.mxu0 0
    %340 = vmatpush1.bf16.msra.mxu0 0
    %341 = vmatprep.subr.bf16.mxu0 0
    %342 = vmatpush1.bf16.msra.mxu0 0
    %343 = vmatprep.subr.bf16.mxu0 0
    %344 = vmatpush1.bf16.msra.mxu0 0
    %345 = vmatprep.subr.bf16.mxu0 0
    %346 = vmatpush1.bf16.msra.mxu0 0
    %347 = vmatprep.subr.bf16.mxu0 0
    %348 = vmatpush1.bf16.msra.mxu0 0
    %349 = vmatprep.subr.bf16.mxu0 0
    %350 = vmatpush1.bf16.msra.mxu0 %v167
    %351 = vmatprep.subr.bf16.mxu0 0
    %352 = vmatpush1.bf16.msra.mxu0 %v162
    %353 = vmatprep.subr.bf16.mxu0 0
    %354 = vmatpush2.bf16.msra.mxu0 0
    %355 = vmatprep.subr.bf16.mxu0 0
    %356 = vmatpush2.bf16.msra.mxu0 0
    %357 = vmatprep.subr.bf16.mxu0 0
    %358 = vmatpush2.bf16.msra.mxu0 0
    %359 = vmatprep.subr.bf16.mxu0 0
    %360 = vmatpush2.bf16.msra.mxu0 0
    %361 = vmatprep.subr.bf16.mxu0 0
    %362 = vmatpush2.bf16.msra.mxu0 0
    %363 = vmatprep.subr.bf16.mxu0 0
    %364 = vmatpush2.bf16.msra.mxu0 0
    %365 = vmatprep.subr.bf16.mxu0 0
    %366 = vmatpush2.bf16.msra.mxu0 0
    %367 = vmatprep.subr.bf16.mxu0 0
    %368 = vmatpush2.bf16.msra.mxu0 0
    %369 = vmatprep.mubr.bf16.mxu0 0
    %370 = vmatmul.mubr.bf16.gmra.mxu0 %v180
    %v371 = vpop.f32.mrf.mxu0
    %v372 = vadd.f32 %v120, %v371
    %v373 = vpop.f32.mrf.mxu0
    %v374 = vpop.f32.mrf.mxu0
    %v375 = vadd.f32 %v120, %v374
    %v376 = vpop.f32.mrf.mxu0
    %377 = vmatprep.mubr.bf16.mxu0 0
    %378 = vmatmul.mubr.bf16.gmra.mxu0 %v183
    %v379 = vpop.f32.mrf.mxu0
    %v380 = vadd.f32 %v120, %v379
    %v381 = vpop.f32.mrf.mxu0
    %v382 = vpop.f32.mrf.mxu0
    %v383 = vadd.f32 %v120, %v382
    %v384 = vpop.f32.mrf.mxu0
    %385 = vmatprep.mubr.bf16.mxu0 0
    %386 = vmatmul.mubr.bf16.gmra.mxu0 %v186
    %v387 = vpop.f32.mrf.mxu0
    %v388 = vadd.f32 %v120, %v387
    %v389 = vpop.f32.mrf.mxu0
    %v390 = vpop.f32.mrf.mxu0
    %v391 = vadd.f32 %v120, %v390
    %v392 = vpop.f32.mrf.mxu0
    %393 = vmatprep.mubr.bf16.mxu0 0
    %394 = vmatmul.mubr.bf16.gmra.mxu0 %v189
    %v395 = vpop.f32.mrf.mxu0
    %v396 = vadd.f32 %v120, %v395
    %v397 = vpop.f32.mrf.mxu0
    %v398 = vpop.f32.mrf.mxu0
    %v399 = vadd.f32 %v120, %v398
    %v400 = vpop.f32.mrf.mxu0
    %401 = vdwg.mxu0
    %v402 = vmax.f32 %v226, 0.0
    %v403 = vmax.f32 %v228, 0.0
    %v404 = vmax.f32 %v299, 0.0
    %v405 = vmax.f32 %v301, 0.0
    %v406 = vmax.f32 %v372, 0.0
    %v407 = vmax.f32 %v230, 0.0
    %v408 = vmax.f32 %v232, 0.0
    %v409 = vmax.f32 %v303, 0.0
    %v410 = vmax.f32 %v305, 0.0
    %v411 = vmax.f32 %v375, 0.0
    %v412 = vmax.f32 %v236, 0.0
    %v413 = vmax.f32 %v238, 0.0
    %v414 = vmax.f32 %v309, 0.0
    %v415 = vmax.f32 %v311, 0.0
    %v416 = vmax.f32 %v380, 0.0
    %v417 = vmax.f32 %v240, 0.0
    %v418 = vmax.f32 %v242, 0.0
    %v419 = vmax.f32 %v313, 0.0
    %v420 = vmax.f32 %v315, 0.0
    %v421 = vmax.f32 %v383, 0.0
    %v422 = vmax.f32 %v246, 0.0
    %v423 = vmax.f32 %v248, 0.0
    %v424 = vmax.f32 %v319, 0.0
    %v425 = vmax.f32 %v321, 0.0
    %v426 = vmax.f32 %v388, 0.0
    %v427 = vmax.f32 %v250, 0.0
    %v428 = vmax.f32 %v252, 0.0
    %v429 = vmax.f32 %v323, 0.0
    %v430 = vmax.f32 %v325, 0.0
    %v431 = vmax.f32 %v391, 0.0
    %v432 = vmax.f32 %v256, 0.0
    %v433 = vmax.f32 %v258, 0.0
    %v434 = vmax.f32 %v329, 0.0
    %v435 = vmax.f32 %v331, 0.0
    %v436 = vmax.f32 %v396, 0.0
    %v437 = vmax.f32 %v260, 0.0
    %v438 = vmax.f32 %v262, 0.0
    %v439 = vmax.f32 %v333, 0.0
    %v440 = vmax.f32 %v335, 0.0
    %v441 = vmax.f32 %v399, 0.0
    %v442 = vpack.c.bf16 %v407, %v402
    %v443 = vpack.c.bf16 %v408, %v403
    %v444 = vpack.c.bf16 %v409, %v404
    %v445 = vpack.c.bf16 %v410, %v405
    %v446 = vpack.c.bf16 %v411, %v406
    %v447 = vpack.c.bf16 %v417, %v412
    %v448 = vpack.c.bf16 %v418, %v413
    %v449 = vpack.c.bf16 %v419, %v414
    %v450 = vpack.c.bf16 %v420, %v415
    %v451 = vpack.c.bf16 %v421, %v416
    %v452 = vpack.c.bf16 %v427, %v422
    %v453 = vpack.c.bf16 %v428, %v423
    %v454 = vpack.c.bf16 %v429, %v424
    %v455 = vpack.c.bf16 %v430, %v425
    %v456 = vpack.c.bf16 %v431, %v426
    %v457 = vpack.c.bf16 %v437, %v432
    %v458 = vpack.c.bf16 %v438, %v433
    %v459 = vpack.c.bf16 %v439, %v434
    %v460 = vpack.c.bf16 %v440, %v435
    %v461 = vpack.c.bf16 %v441, %v436
    %v462 = vld [vmem:[#allocation2] sm:$0xff]
    %v463 = vld [vmem:[#allocation2 + $0x8] sm:$0xff]
    %v464 = vld [vmem:[#allocation2 + $0x10] sm:$0xff]
    %v465 = vld [vmem:[#allocation2 + $0x18] sm:$0xff]
    %v466 = vld [vmem:[#allocation2 + $0x20] sm:$0xff]
    %v467 = vld [vmem:[#allocation2 + $0x28] sm:$0xff]
    %v468 = vld [vmem:[#allocation2 + $0x30] sm:$0xff]
    %v469 = vld [vmem:[#allocation2 + $0x38] sm:$0xff]
    %v470 = vld [vmem:[#allocation2 + $0x40] sm:$0xff]
    %v471 = vld [vmem:[#allocation2 + $0x48] sm:$0xff]
    %v472 = vld [vmem:[#allocation2 + $0x50] sm:$0xff]
    %v473 = vld [vmem:[#allocation2 + $0x58] sm:$0xff]
    %v474 = vld [vmem:[#allocation2 + $0x60] sm:$0xff]
    %v475 = vld [vmem:[#allocation2 + $0x68] sm:$0xff]
    %v476 = vld [vmem:[#allocation2 + $0x70] sm:$0xff]
    %v477 = vld [vmem:[#allocation2 + $0x78] sm:$0xff]
    %v478 = vld [vmem:[#allocation2 + $0x80] sm:$0xff]
    %v479 = vld [vmem:[#allocation2 + $0x88] sm:$0xff]
    %v480 = vld [vmem:[#allocation2 + $0x90] sm:$0xff]
    %v481 = vld [vmem:[#allocation2 + $0x98] sm:$0xff]
    %v482 = vld [vmem:[#allocation2 + $0xa0] sm:$0xff]
    %v483 = vld [vmem:[#allocation2 + $0xa8] sm:$0xff]
    %v484 = vld [vmem:[#allocation2 + $0xb0] sm:$0xff]
    %v485 = vld [vmem:[#allocation2 + $0xb8] sm:$0xff]
    %v486 = vld [vmem:[#allocation2 + $0xc0] sm:$0xff]
    %v487 = vld [vmem:[#allocation2 + $0xc8] sm:$0xff]
    %v488 = vld [vmem:[#allocation2 + $0xd0] sm:$0xff]
    %v489 = vld [vmem:[#allocation2 + $0xd8] sm:$0xff]
    %v490 = vld [vmem:[#allocation2 + $0xe0] sm:$0xff]
    %v491 = vld [vmem:[#allocation2 + $0xe8] sm:$0xff]
    %v492 = vld [vmem:[#allocation2 + $0xf0] sm:$0xff]
    %v493 = vld [vmem:[#allocation2 + $0xf8] sm:$0xff]
    %v494 = vld [vmem:[#allocation2 + $0x100] sm:$0xff]
    %v495 = vld [vmem:[#allocation2 + $0x108] sm:$0xff]
    %v496 = vld [vmem:[#allocation2 + $0x110] sm:$0xff]
    %v497 = vld [vmem:[#allocation2 + $0x118] sm:$0xff]
    %v498 = vld [vmem:[#allocation2 + $0x120] sm:$0xff]
    %v499 = vld [vmem:[#allocation2 + $0x128] sm:$0xff]
    %v500 = vld [vmem:[#allocation2 + $0x130] sm:$0xff]
    %v501 = vld [vmem:[#allocation2 + $0x138] sm:$0xff]
    %v502 = vld [vmem:[#allocation2 + $0x140] sm:$0xff]
    %v503 = vld [vmem:[#allocation2 + $0x148] sm:$0xff]
    %v504 = vld [vmem:[#allocation2 + $0x150] sm:$0xff]
    %v505 = vld [vmem:[#allocation2 + $0x158] sm:$0xff]
    %v506 = vld [vmem:[#allocation2 + $0x160] sm:$0xff]
    %v507 = vld [vmem:[#allocation2 + $0x168] sm:$0xff]
    %v508 = vld [vmem:[#allocation2 + $0x170] sm:$0xff]
    %v509 = vld [vmem:[#allocation2 + $0x178] sm:$0xff]
    %v510 = vld [vmem:[#allocation2 + $0x180] sm:$0xff]
    %v511 = vld [vmem:[#allocation2 + $0x188] sm:$0xff]
    %v512 = vld [vmem:[#allocation2 + $0x190] sm:$0xff]
    %v513 = vld [vmem:[#allocation2 + $0x198] sm:$0xff]
    %v514 = vld [vmem:[#allocation2 + $0x1a0] sm:$0xff]
    %v515 = vld [vmem:[#allocation2 + $0x1a8] sm:$0xff]
    %v516 = vld [vmem:[#allocation2 + $0x1b0] sm:$0xff]
    %v517 = vld [vmem:[#allocation2 + $0x1b8] sm:$0xff]
    %v518 = vld [vmem:[#allocation2 + $0x1c0] sm:$0xff]
    %v519 = vld [vmem:[#allocation2 + $0x1c8] sm:$0xff]
    %v520 = vld [vmem:[#allocation2 + $0x1d0] sm:$0xff]
    %v521 = vld [vmem:[#allocation2 + $0x1d8] sm:$0xff]
    %v522 = vld [vmem:[#allocation2 + $0x1e0] sm:$0xff]
    %v523 = vld [vmem:[#allocation2 + $0x1e8] sm:$0xff]
    %v524 = vld [vmem:[#allocation2 + $0x1f0] sm:$0xff]
    %v525 = vld [vmem:[#allocation2 + $0x1f8] sm:$0xff]
    %v526 = vld [vmem:[#allocation2 + $0x200] sm:$0xff]
    %v527 = vld [vmem:[#allocation2 + $0x208] sm:$0xff]
    %v528 = vld [vmem:[#allocation2 + $0x210] sm:$0xff]
    %v529 = vld [vmem:[#allocation2 + $0x218] sm:$0xff]
    %v530 = vld [vmem:[#allocation2 + $0x220] sm:$0xff]
    %v531 = vld [vmem:[#allocation2 + $0x228] sm:$0xff]
    %v532 = vld [vmem:[#allocation2 + $0x230] sm:$0xff]
    %v533 = vld [vmem:[#allocation2 + $0x238] sm:$0xff]
    %v534 = vld [vmem:[#allocation2 + $0x240] sm:$0xff]
    %v535 = vld [vmem:[#allocation2 + $0x248] sm:$0xff]
    %v536 = vld [vmem:[#allocation2 + $0x250] sm:$0xff]
    %v537 = vld [vmem:[#allocation2 + $0x258] sm:$0xff]
    %v538 = vld [vmem:[#allocation2 + $0x260] sm:$0xff]
    %v539 = vld [vmem:[#allocation2 + $0x268] sm:$0xff]
    %v540 = vld [vmem:[#allocation2 + $0x270] sm:$0xff]
    %v541 = vld [vmem:[#allocation2 + $0x278] sm:$0xff]
    %v542 = vld [vmem:[#allocation2 + $0x280] sm:$0xff]
    %v543 = vld [vmem:[#allocation2 + $0x288] sm:$0xff]
    %v544 = vld [vmem:[#allocation2 + $0x290] sm:$0xff]
    %v545 = vld [vmem:[#allocation2 + $0x298] sm:$0xff]
    %v546 = vld [vmem:[#allocation2 + $0x2a0] sm:$0xff]
    %v547 = vld [vmem:[#allocation2 + $0x2a8] sm:$0xff]
    %v548 = vld [vmem:[#allocation2 + $0x2b0] sm:$0xff]
    %v549 = vld [vmem:[#allocation2 + $0x2b8] sm:$0xff]
    %v550 = vld [vmem:[#allocation2 + $0x2c0] sm:$0xff]
    %v551 = vld [vmem:[#allocation2 + $0x2c8] sm:$0xff]
    %v552 = vld [vmem:[#allocation2 + $0x2d0] sm:$0xff]
    %v553 = vld [vmem:[#allocation2 + $0x2d8] sm:$0xff]
    %v554 = vld [vmem:[#allocation2 + $0x2e0] sm:$0xff]
    %v555 = vld [vmem:[#allocation2 + $0x2e8] sm:$0xff]
    %v556 = vld [vmem:[#allocation2 + $0x2f0] sm:$0xff]
    %v557 = vld [vmem:[#allocation2 + $0x2f8] sm:$0xff]
    %v558 = vld [vmem:[#allocation2 + $0x300] sm:$0xff]
    %v559 = vld [vmem:[#allocation2 + $0x308] sm:$0xff]
    %v560 = vld [vmem:[#allocation2 + $0x310] sm:$0xff]
    %v561 = vld [vmem:[#allocation2 + $0x318] sm:$0xff]
    %v562 = vld [vmem:[#allocation2 + $0x320] sm:$0xff]
    %v563 = vld [vmem:[#allocation2 + $0x328] sm:$0xff]
    %v564 = vld [vmem:[#allocation2 + $0x330] sm:$0xff]
    %v565 = vld [vmem:[#allocation2 + $0x338] sm:$0xff]
    %v566 = vld [vmem:[#allocation2 + $0x340] sm:$0xff]
    %v567 = vld [vmem:[#allocation2 + $0x348] sm:$0xff]
    %v568 = vld [vmem:[#allocation2 + $0x350] sm:$0xff]
    %v569 = vld [vmem:[#allocation2 + $0x358] sm:$0xff]
    %v570 = vld [vmem:[#allocation2 + $0x360] sm:$0xff]
    %v571 = vld [vmem:[#allocation2 + $0x368] sm:$0xff]
    %v572 = vld [vmem:[#allocation2 + $0x370] sm:$0xff]
    %v573 = vld [vmem:[#allocation2 + $0x378] sm:$0xff]
    %v574 = vld [vmem:[#allocation2 + $0x380] sm:$0xff]
    %v575 = vld [vmem:[#allocation2 + $0x388] sm:$0xff]
    %v576 = vld [vmem:[#allocation2 + $0x390] sm:$0xff]
    %v577 = vld [vmem:[#allocation2 + $0x398] sm:$0xff]
    %v578 = vld [vmem:[#allocation2 + $0x3a0] sm:$0xff]
    %v579 = vld [vmem:[#allocation2 + $0x3a8] sm:$0xff]
    %v580 = vld [vmem:[#allocation2 + $0x3b0] sm:$0xff]
    %v581 = vld [vmem:[#allocation2 + $0x3b8] sm:$0xff]
    %v582 = vld [vmem:[#allocation2 + $0x3c0] sm:$0xff]
    %v583 = vld [vmem:[#allocation2 + $0x3c8] sm:$0xff]
    %v584 = vld [vmem:[#allocation2 + $0x3d0] sm:$0xff]
    %v585 = vld [vmem:[#allocation2 + $0x3d8] sm:$0xff]
    %v586 = vld [vmem:[#allocation2 + $0x3e0] sm:$0xff]
    %v587 = vld [vmem:[#allocation2 + $0x3e8] sm:$0xff]
    %v588 = vld [vmem:[#allocation2 + $0x3f0] sm:$0xff]
    %v589 = vld [vmem:[#allocation2 + $0x3f8] sm:$0xff]
    %v590 = vld [vmem:[#allocation2 + $0x400] sm:$0xff]
    %v591 = vld [vmem:[#allocation2 + $0x408] sm:$0xff]
    %v592 = vld [vmem:[#allocation2 + $0x410] sm:$0xff]
    %v593 = vld [vmem:[#allocation2 + $0x418] sm:$0xff]
    %v594 = vld [vmem:[#allocation2 + $0x420] sm:$0xff]
    %v595 = vld [vmem:[#allocation2 + $0x428] sm:$0xff]
    %v596 = vld [vmem:[#allocation2 + $0x430] sm:$0xff]
    %v597 = vld [vmem:[#allocation2 + $0x438] sm:$0xff]
    %v598 = vld [vmem:[#allocation2 + $0x440] sm:$0xff]
    %v599 = vld [vmem:[#allocation2 + $0x448] sm:$0xff]
    %v600 = vld [vmem:[#allocation2 + $0x450] sm:$0xff]
    %v601 = vld [vmem:[#allocation2 + $0x458] sm:$0xff]
    %v602 = vld [vmem:[#allocation2 + $0x460] sm:$0xff]
    %v603 = vld [vmem:[#allocation2 + $0x468] sm:$0xff]
    %v604 = vld [vmem:[#allocation2 + $0x470] sm:$0xff]
    %v605 = vld [vmem:[#allocation2 + $0x478] sm:$0xff]
    %v606 = vld [vmem:[#allocation2 + $0x480] sm:$0xff]
    %v607 = vld [vmem:[#allocation2 + $0x488] sm:$0xff]
    %v608 = vld [vmem:[#allocation2 + $0x490] sm:$0xff]
    %v609 = vld [vmem:[#allocation2 + $0x498] sm:$0xff]
    %v610 = vld [vmem:[#allocation2 + $0x4a0] sm:$0xff]
    %v611 = vld [vmem:[#allocation2 + $0x4a8] sm:$0xff]
    %v612 = vld [vmem:[#allocation2 + $0x4b0] sm:$0xff]
    %v613 = vld [vmem:[#allocation2 + $0x4b8] sm:$0xff]
    %v614 = vld [vmem:[#allocation2 + $0x4c0] sm:$0xff]
    %v615 = vld [vmem:[#allocation2 + $0x4c8] sm:$0xff]
    %v616 = vld [vmem:[#allocation2 + $0x4d0] sm:$0xff]
    %v617 = vld [vmem:[#allocation2 + $0x4d8] sm:$0xff]
    %v618 = vld [vmem:[#allocation2 + $0x4e0] sm:$0xff]
    %v619 = vld [vmem:[#allocation2 + $0x4e8] sm:$0xff]
    %v620 = vld [vmem:[#allocation2 + $0x4f0] sm:$0xff]
    %v621 = vld [vmem:[#allocation2 + $0x4f8] sm:$0xff]
    %v622 = vld [vmem:[%s4] sm:$0xf]
    %v624 = vlaneseq
    %v625 = vshrl.u32 %v624, 7
    %v626 = vsub.s32 0, %v625
    %v627 = vrot.slane %v622, %v626
    %v628 = vlaneseq
    %v629 = vshrl.u32 %v628, 7
    %v630 = vsub.s32 1, %v629
    %v631 = vrot.slane %v622, %v630
    %v632 = vlaneseq
    %v633 = vshrl.u32 %v632, 7
    %v634 = vsub.s32 2, %v633
    %v635 = vrot.slane %v622, %v634
    %v636 = vlaneseq
    %v637 = vshrl.u32 %v636, 7
    %v638 = vsub.s32 3, %v637
    %v639 = vrot.slane %v622, %v638
    %v804 = vunpack.c.l.b16 %v462
    %v805 = vunpack.c.h.b16 %v462
    %v806 = vunpack.c.l.b16 %v463
    %v807 = vunpack.c.h.b16 %v463
    %v808 = vunpack.c.l.b16 %v464
    %v809 = vunpack.c.h.b16 %v464
    %v810 = vunpack.c.l.b16 %v465
    %v811 = vunpack.c.h.b16 %v465
    %v812 = vunpack.c.l.b16 %v466
    %v813 = vunpack.c.h.b16 %v466
    %v814 = vunpack.c.l.b16 %v467
    %v815 = vunpack.c.h.b16 %v467
    %v816 = vunpack.c.l.b16 %v468
    %v817 = vunpack.c.h.b16 %v468
    %v818 = vunpack.c.l.b16 %v469
    %v819 = vunpack.c.h.b16 %v469
    %v820 = vunpack.c.l.b16 %v470
    %v821 = vunpack.c.h.b16 %v470
    %v822 = vunpack.c.l.b16 %v471
    %v823 = vunpack.c.h.b16 %v471
    %v824 = vunpack.c.l.b16 %v472
    %v825 = vunpack.c.h.b16 %v472
    %v826 = vunpack.c.l.b16 %v473
    %v827 = vunpack.c.h.b16 %v473
    %v828 = vunpack.c.l.b16 %v474
    %v829 = vunpack.c.h.b16 %v474
    %v830 = vunpack.c.l.b16 %v475
    %v831 = vunpack.c.h.b16 %v475
    %v832 = vunpack.c.l.b16 %v476
    %v833 = vunpack.c.h.b16 %v476
    %v834 = vunpack.c.l.b16 %v477
    %v835 = vunpack.c.h.b16 %v477
    %v836 = vunpack.c.l.b16 %v478
    %v837 = vunpack.c.h.b16 %v478
    %v838 = vunpack.c.l.b16 %v479
    %v839 = vunpack.c.h.b16 %v479
    %v840 = vunpack.c.l.b16 %v480
    %v841 = vunpack.c.h.b16 %v480
    %v842 = vunpack.c.l.b16 %v481
    %v843 = vunpack.c.h.b16 %v481
    %v844 = vunpack.c.l.b16 %v482
    %v845 = vunpack.c.h.b16 %v482
    %v846 = vunpack.c.l.b16 %v483
    %v847 = vunpack.c.h.b16 %v483
    %v848 = vunpack.c.l.b16 %v484
    %v849 = vunpack.c.h.b16 %v484
    %v850 = vunpack.c.l.b16 %v485
    %v851 = vunpack.c.h.b16 %v485
    %v852 = vunpack.c.l.b16 %v486
    %v853 = vunpack.c.h.b16 %v486
    %v854 = vunpack.c.l.b16 %v487
    %v855 = vunpack.c.h.b16 %v487
    %v856 = vunpack.c.l.b16 %v488
    %v857 = vunpack.c.h.b16 %v488
    %v858 = vunpack.c.l.b16 %v489
    %v859 = vunpack.c.h.b16 %v489
    %v860 = vunpack.c.l.b16 %v490
    %v861 = vunpack.c.h.b16 %v490
    %v862 = vunpack.c.l.b16 %v491
    %v863 = vunpack.c.h.b16 %v491
    %v864 = vunpack.c.l.b16 %v492
    %v865 = vunpack.c.h.b16 %v492
    %v866 = vunpack.c.l.b16 %v493
    %v867 = vunpack.c.h.b16 %v493
    %v868 = vunpack.c.l.b16 %v494
    %v869 = vunpack.c.h.b16 %v494
    %v870 = vunpack.c.l.b16 %v495
    %v871 = vunpack.c.h.b16 %v495
    %v872 = vunpack.c.l.b16 %v496
    %v873 = vunpack.c.h.b16 %v496
    %v874 = vunpack.c.l.b16 %v497
    %v875 = vunpack.c.h.b16 %v497
    %v876 = vunpack.c.l.b16 %v498
    %v877 = vunpack.c.h.b16 %v498
    %v878 = vunpack.c.l.b16 %v499
    %v879 = vunpack.c.h.b16 %v499
    %v880 = vunpack.c.l.b16 %v500
    %v881 = vunpack.c.h.b16 %v500
    %v882 = vunpack.c.l.b16 %v501
    %v883 = vunpack.c.h.b16 %v501
    %v884 = vunpack.c.l.b16 %v502
    %v885 = vunpack.c.h.b16 %v502
    %v886 = vunpack.c.l.b16 %v503
    %v887 = vunpack.c.h.b16 %v503
    %v888 = vunpack.c.l.b16 %v504
    %v889 = vunpack.c.h.b16 %v504
    %v890 = vunpack.c.l.b16 %v505
    %v891 = vunpack.c.h.b16 %v505
    %v892 = vunpack.c.l.b16 %v506
    %v893 = vunpack.c.h.b16 %v506
    %v894 = vunpack.c.l.b16 %v507
    %v895 = vunpack.c.h.b16 %v507
    %v896 = vunpack.c.l.b16 %v508
    %v897 = vunpack.c.h.b16 %v508
    %v898 = vunpack.c.l.b16 %v509
    %v899 = vunpack.c.h.b16 %v509
    %v900 = vunpack.c.l.b16 %v510
    %v901 = vunpack.c.h.b16 %v510
    %v902 = vunpack.c.l.b16 %v511
    %v903 = vunpack.c.h.b16 %v511
    %v904 = vunpack.c.l.b16 %v512
    %v905 = vunpack.c.h.b16 %v512
    %v906 = vunpack.c.l.b16 %v513
    %v907 = vunpack.c.h.b16 %v513
    %v908 = vunpack.c.l.b16 %v514
    %v909 = vunpack.c.h.b16 %v514
    %v910 = vunpack.c.l.b16 %v515
    %v911 = vunpack.c.h.b16 %v515
    %v912 = vunpack.c.l.b16 %v516
    %v913 = vunpack.c.h.b16 %v516
    %v914 = vunpack.c.l.b16 %v517
    %v915 = vunpack.c.h.b16 %v517
    %v916 = vunpack.c.l.b16 %v518
    %v917 = vunpack.c.h.b16 %v518
    %v918 = vunpack.c.l.b16 %v519
    %v919 = vunpack.c.h.b16 %v519
    %v920 = vunpack.c.l.b16 %v520
    %v921 = vunpack.c.h.b16 %v520
    %v922 = vunpack.c.l.b16 %v521
    %v923 = vunpack.c.h.b16 %v521
    %v924 = vunpack.c.l.b16 %v522
    %v925 = vunpack.c.h.b16 %v522
    %v926 = vunpack.c.l.b16 %v523
    %v927 = vunpack.c.h.b16 %v523
    %v928 = vunpack.c.l.b16 %v524
    %v929 = vunpack.c.h.b16 %v524
    %v930 = vunpack.c.l.b16 %v525
    %v931 = vunpack.c.h.b16 %v525
    %v932 = vunpack.c.l.b16 %v526
    %v933 = vunpack.c.h.b16 %v526
    %v934 = vunpack.c.l.b16 %v527
    %v935 = vunpack.c.h.b16 %v527
    %v936 = vunpack.c.l.b16 %v528
    %v937 = vunpack.c.h.b16 %v528
    %v938 = vunpack.c.l.b16 %v529
    %v939 = vunpack.c.h.b16 %v529
    %v940 = vunpack.c.l.b16 %v530
    %v941 = vunpack.c.h.b16 %v530
    %v942 = vunpack.c.l.b16 %v531
    %v943 = vunpack.c.h.b16 %v531
    %v944 = vunpack.c.l.b16 %v532
    %v945 = vunpack.c.h.b16 %v532
    %v946 = vunpack.c.l.b16 %v533
    %v947 = vunpack.c.h.b16 %v533
    %v948 = vunpack.c.l.b16 %v534
    %v949 = vunpack.c.h.b16 %v534
    %v950 = vunpack.c.l.b16 %v535
    %v951 = vunpack.c.h.b16 %v535
    %v952 = vunpack.c.l.b16 %v536
    %v953 = vunpack.c.h.b16 %v536
    %v954 = vunpack.c.l.b16 %v537
    %v955 = vunpack.c.h.b16 %v537
    %v956 = vunpack.c.l.b16 %v538
    %v957 = vunpack.c.h.b16 %v538
    %v958 = vunpack.c.l.b16 %v539
    %v959 = vunpack.c.h.b16 %v539
    %v960 = vunpack.c.l.b16 %v540
    %v961 = vunpack.c.h.b16 %v540
    %v962 = vunpack.c.l.b16 %v541
    %v963 = vunpack.c.h.b16 %v541
    %v964 = vunpack.c.l.b16 %v542
    %v965 = vunpack.c.h.b16 %v542
    %v966 = vunpack.c.l.b16 %v543
    %v967 = vunpack.c.h.b16 %v543
    %v968 = vunpack.c.l.b16 %v544
    %v969 = vunpack.c.h.b16 %v544
    %v970 = vunpack.c.l.b16 %v545
    %v971 = vunpack.c.h.b16 %v545
    %v972 = vunpack.c.l.b16 %v546
    %v973 = vunpack.c.h.b16 %v546
    %v974 = vunpack.c.l.b16 %v547
    %v975 = vunpack.c.h.b16 %v547
    %v976 = vunpack.c.l.b16 %v548
    %v977 = vunpack.c.h.b16 %v548
    %v978 = vunpack.c.l.b16 %v549
    %v979 = vunpack.c.h.b16 %v549
    %v980 = vunpack.c.l.b16 %v550
    %v981 = vunpack.c.h.b16 %v550
    %v982 = vunpack.c.l.b16 %v551
    %v983 = vunpack.c.h.b16 %v551
    %v984 = vunpack.c.l.b16 %v552
    %v985 = vunpack.c.h.b16 %v552
    %v986 = vunpack.c.l.b16 %v553
    %v987 = vunpack.c.h.b16 %v553
    %v988 = vunpack.c.l.b16 %v554
    %v989 = vunpack.c.h.b16 %v554
    %v990 = vunpack.c.l.b16 %v555
    %v991 = vunpack.c.h.b16 %v555
    %v992 = vunpack.c.l.b16 %v556
    %v993 = vunpack.c.h.b16 %v556
    %v994 = vunpack.c.l.b16 %v557
    %v995 = vunpack.c.h.b16 %v557
    %v996 = vunpack.c.l.b16 %v558
    %v997 = vunpack.c.h.b16 %v558
    %v998 = vunpack.c.l.b16 %v559
    %v999 = vunpack.c.h.b16 %v559
    %v1000 = vunpack.c.l.b16 %v560
    %v1001 = vunpack.c.h.b16 %v560
    %v1002 = vunpack.c.l.b16 %v561
    %v1003 = vunpack.c.h.b16 %v561
    %v1004 = vunpack.c.l.b16 %v562
    %v1005 = vunpack.c.h.b16 %v562
    %v1006 = vunpack.c.l.b16 %v563
    %v1007 = vunpack.c.h.b16 %v563
    %v1008 = vunpack.c.l.b16 %v564
    %v1009 = vunpack.c.h.b16 %v564
    %v1010 = vunpack.c.l.b16 %v565
    %v1011 = vunpack.c.h.b16 %v565
    %v1012 = vunpack.c.l.b16 %v566
    %v1013 = vunpack.c.h.b16 %v566
    %v1014 = vunpack.c.l.b16 %v567
    %v1015 = vunpack.c.h.b16 %v567
    %v1016 = vunpack.c.l.b16 %v568
    %v1017 = vunpack.c.h.b16 %v568
    %v1018 = vunpack.c.l.b16 %v569
    %v1019 = vunpack.c.h.b16 %v569
    %v1020 = vunpack.c.l.b16 %v570
    %v1021 = vunpack.c.h.b16 %v570
    %v1022 = vunpack.c.l.b16 %v571
    %v1023 = vunpack.c.h.b16 %v571
    %v1024 = vunpack.c.l.b16 %v572
    %v1025 = vunpack.c.h.b16 %v572
    %v1026 = vunpack.c.l.b16 %v573
    %v1027 = vunpack.c.h.b16 %v573
    %v1028 = vunpack.c.l.b16 %v574
    %v1029 = vunpack.c.h.b16 %v574
    %v1030 = vunpack.c.l.b16 %v575
    %v1031 = vunpack.c.h.b16 %v575
    %v1032 = vunpack.c.l.b16 %v576
    %v1033 = vunpack.c.h.b16 %v576
    %v1034 = vunpack.c.l.b16 %v577
    %v1035 = vunpack.c.h.b16 %v577
    %v1036 = vunpack.c.l.b16 %v578
    %v1037 = vunpack.c.h.b16 %v578
    %v1038 = vunpack.c.l.b16 %v579
    %v1039 = vunpack.c.h.b16 %v579
    %v1040 = vunpack.c.l.b16 %v580
    %v1041 = vunpack.c.h.b16 %v580
    %v1042 = vunpack.c.l.b16 %v581
    %v1043 = vunpack.c.h.b16 %v581
    %v1044 = vunpack.c.l.b16 %v582
    %v1045 = vunpack.c.h.b16 %v582
    %v1046 = vunpack.c.l.b16 %v583
    %v1047 = vunpack.c.h.b16 %v583
    %v1048 = vunpack.c.l.b16 %v584
    %v1049 = vunpack.c.h.b16 %v584
    %v1050 = vunpack.c.l.b16 %v585
    %v1051 = vunpack.c.h.b16 %v585
    %v1052 = vunpack.c.l.b16 %v586
    %v1053 = vunpack.c.h.b16 %v586
    %v1054 = vunpack.c.l.b16 %v587
    %v1055 = vunpack.c.h.b16 %v587
    %v1056 = vunpack.c.l.b16 %v588
    %v1057 = vunpack.c.h.b16 %v588
    %v1058 = vunpack.c.l.b16 %v589
    %v1059 = vunpack.c.h.b16 %v589
    %v1060 = vunpack.c.l.b16 %v590
    %v1061 = vunpack.c.h.b16 %v590
    %v1062 = vunpack.c.l.b16 %v591
    %v1063 = vunpack.c.h.b16 %v591
    %v1064 = vunpack.c.l.b16 %v592
    %v1065 = vunpack.c.h.b16 %v592
    %v1066 = vunpack.c.l.b16 %v593
    %v1067 = vunpack.c.h.b16 %v593
    %v1068 = vunpack.c.l.b16 %v594
    %v1069 = vunpack.c.h.b16 %v594
    %v1070 = vunpack.c.l.b16 %v595
    %v1071 = vunpack.c.h.b16 %v595
    %v1072 = vunpack.c.l.b16 %v596
    %v1073 = vunpack.c.h.b16 %v596
    %v1074 = vunpack.c.l.b16 %v597
    %v1075 = vunpack.c.h.b16 %v597
    %v1076 = vunpack.c.l.b16 %v598
    %v1077 = vunpack.c.h.b16 %v598
    %v1078 = vunpack.c.l.b16 %v599
    %v1079 = vunpack.c.h.b16 %v599
    %v1080 = vunpack.c.l.b16 %v600
    %v1081 = vunpack.c.h.b16 %v600
    %v1082 = vunpack.c.l.b16 %v601
    %v1083 = vunpack.c.h.b16 %v601
    %v1084 = vunpack.c.l.b16 %v602
    %v1085 = vunpack.c.h.b16 %v602
    %v1086 = vunpack.c.l.b16 %v603
    %v1087 = vunpack.c.h.b16 %v603
    %v1088 = vunpack.c.l.b16 %v604
    %v1089 = vunpack.c.h.b16 %v604
    %v1090 = vunpack.c.l.b16 %v605
    %v1091 = vunpack.c.h.b16 %v605
    %v1092 = vunpack.c.l.b16 %v606
    %v1093 = vunpack.c.h.b16 %v606
    %v1094 = vunpack.c.l.b16 %v607
    %v1095 = vunpack.c.h.b16 %v607
    %v1096 = vunpack.c.l.b16 %v608
    %v1097 = vunpack.c.h.b16 %v608
    %v1098 = vunpack.c.l.b16 %v609
    %v1099 = vunpack.c.h.b16 %v609
    %v1100 = vunpack.c.l.b16 %v610
    %v1101 = vunpack.c.h.b16 %v610
    %v1102 = vunpack.c.l.b16 %v611
    %v1103 = vunpack.c.h.b16 %v611
    %v1104 = vunpack.c.l.b16 %v612
    %v1105 = vunpack.c.h.b16 %v612
    %v1106 = vunpack.c.l.b16 %v613
    %v1107 = vunpack.c.h.b16 %v613
    %v1108 = vunpack.c.l.b16 %v614
    %v1109 = vunpack.c.h.b16 %v614
    %v1110 = vunpack.c.l.b16 %v615
    %v1111 = vunpack.c.h.b16 %v615
    %v1112 = vunpack.c.l.b16 %v616
    %v1113 = vunpack.c.h.b16 %v616
    %v1114 = vunpack.c.l.b16 %v617
    %v1115 = vunpack.c.h.b16 %v617
    %v1116 = vunpack.c.l.b16 %v618
    %v1117 = vunpack.c.h.b16 %v618
    %v1118 = vunpack.c.l.b16 %v619
    %v1119 = vunpack.c.h.b16 %v619
    %v1120 = vunpack.c.l.b16 %v620
    %v1121 = vunpack.c.h.b16 %v620
    %v1122 = vunpack.c.l.b16 %v621
    %v1123 = vunpack.c.h.b16 %v621
    %v1124 = vpack.c.b16 %v808, %v804
    %v1125 = vpack.c.b16 %v809, %v805
    %v1126 = vpack.c.b16 %v810, %v806
    %v1127 = vpack.c.b16 %v811, %v807
    %v1128 = vpack.c.b16 %v816, %v812
    %v1129 = vpack.c.b16 %v817, %v813
    %v1130 = vpack.c.b16 %v818, %v814
    %v1131 = vpack.c.b16 %v819, %v815
    %v1132 = vpack.c.b16 %v824, %v820
    %v1133 = vpack.c.b16 %v825, %v821
    %v1134 = vpack.c.b16 %v826, %v822
    %v1135 = vpack.c.b16 %v827, %v823
    %v1136 = vpack.c.b16 %v832, %v828
    %v1137 = vpack.c.b16 %v833, %v829
    %v1138 = vpack.c.b16 %v834, %v830
    %v1139 = vpack.c.b16 %v835, %v831
    %v1140 = vpack.c.b16 %v840, %v836
    %v1141 = vpack.c.b16 %v841, %v837
    %v1142 = vpack.c.b16 %v842, %v838
    %v1143 = vpack.c.b16 %v843, %v839
    %v1144 = vpack.c.b16 %v848, %v844
    %v1145 = vpack.c.b16 %v849, %v845
    %v1146 = vpack.c.b16 %v850, %v846
    %v1147 = vpack.c.b16 %v851, %v847
    %v1148 = vpack.c.b16 %v856, %v852
    %v1149 = vpack.c.b16 %v857, %v853
    %v1150 = vpack.c.b16 %v858, %v854
    %v1151 = vpack.c.b16 %v859, %v855
    %v1152 = vpack.c.b16 %v864, %v860
    %v1153 = vpack.c.b16 %v865, %v861
    %v1154 = vpack.c.b16 %v866, %v862
    %v1155 = vpack.c.b16 %v867, %v863
    %v1156 = vpack.c.b16 %v872, %v868
    %v1157 = vpack.c.b16 %v873, %v869
    %v1158 = vpack.c.b16 %v874, %v870
    %v1159 = vpack.c.b16 %v875, %v871
    %v1160 = vpack.c.b16 %v880, %v876
    %v1161 = vpack.c.b16 %v881, %v877
    %v1162 = vpack.c.b16 %v882, %v878
    %v1163 = vpack.c.b16 %v883, %v879
    %v1164 = vpack.c.b16 %v888, %v884
    %v1165 = vpack.c.b16 %v889, %v885
    %v1166 = vpack.c.b16 %v890, %v886
    %v1167 = vpack.c.b16 %v891, %v887
    %v1168 = vpack.c.b16 %v896, %v892
    %v1169 = vpack.c.b16 %v897, %v893
    %v1170 = vpack.c.b16 %v898, %v894
    %v1171 = vpack.c.b16 %v899, %v895
    %v1172 = vpack.c.b16 %v904, %v900
    %v1173 = vpack.c.b16 %v905, %v901
    %v1174 = vpack.c.b16 %v906, %v902
    %v1175 = vpack.c.b16 %v907, %v903
    %v1176 = vpack.c.b16 %v912, %v908
    %v1177 = vpack.c.b16 %v913, %v909
    %v1178 = vpack.c.b16 %v914, %v910
    %v1179 = vpack.c.b16 %v915, %v911
    %v1180 = vpack.c.b16 %v920, %v916
    %v1181 = vpack.c.b16 %v921, %v917
    %v1182 = vpack.c.b16 %v922, %v918
    %v1183 = vpack.c.b16 %v923, %v919
    %v1184 = vpack.c.b16 %v928, %v924
    %v1185 = vpack.c.b16 %v929, %v925
    %v1186 = vpack.c.b16 %v930, %v926
    %v1187 = vpack.c.b16 %v931, %v927
    %v1188 = vpack.c.b16 %v936, %v932
    %v1189 = vpack.c.b16 %v937, %v933
    %v1190 = vpack.c.b16 %v938, %v934
    %v1191 = vpack.c.b16 %v939, %v935
    %v1192 = vpack.c.b16 %v944, %v940
    %v1193 = vpack.c.b16 %v945, %v941
    %v1194 = vpack.c.b16 %v946, %v942
    %v1195 = vpack.c.b16 %v947, %v943
    %v1196 = vpack.c.b16 %v952, %v948
    %v1197 = vpack.c.b16 %v953, %v949
    %v1198 = vpack.c.b16 %v954, %v950
    %v1199 = vpack.c.b16 %v955, %v951
    %v1200 = vpack.c.b16 %v960, %v956
    %v1201 = vpack.c.b16 %v961, %v957
    %v1202 = vpack.c.b16 %v962, %v958
    %v1203 = vpack.c.b16 %v963, %v959
    %v1204 = vpack.c.b16 %v968, %v964
    %v1205 = vpack.c.b16 %v969, %v965
    %v1206 = vpack.c.b16 %v970, %v966
    %v1207 = vpack.c.b16 %v971, %v967
    %v1208 = vpack.c.b16 %v976, %v972
    %v1209 = vpack.c.b16 %v977, %v973
    %v1210 = vpack.c.b16 %v978, %v974
    %v1211 = vpack.c.b16 %v979, %v975
    %v1212 = vpack.c.b16 %v984, %v980
    %v1213 = vpack.c.b16 %v985, %v981
    %v1214 = vpack.c.b16 %v986, %v982
    %v1215 = vpack.c.b16 %v987, %v983
    %v1216 = vpack.c.b16 %v992, %v988
    %v1217 = vpack.c.b16 %v993, %v989
    %v1218 = vpack.c.b16 %v994, %v990
    %v1219 = vpack.c.b16 %v995, %v991
    %v1220 = vpack.c.b16 %v1000, %v996
    %v1221 = vpack.c.b16 %v1001, %v997
    %v1222 = vpack.c.b16 %v1002, %v998
    %v1223 = vpack.c.b16 %v1003, %v999
    %v1224 = vpack.c.b16 %v1008, %v1004
    %v1225 = vpack.c.b16 %v1009, %v1005
    %v1226 = vpack.c.b16 %v1010, %v1006
    %v1227 = vpack.c.b16 %v1011, %v1007
    %v1228 = vpack.c.b16 %v1016, %v1012
    %v1229 = vpack.c.b16 %v1017, %v1013
    %v1230 = vpack.c.b16 %v1018, %v1014
    %v1231 = vpack.c.b16 %v1019, %v1015
    %v1232 = vpack.c.b16 %v1024, %v1020
    %v1233 = vpack.c.b16 %v1025, %v1021
    %v1234 = vpack.c.b16 %v1026, %v1022
    %v1235 = vpack.c.b16 %v1027, %v1023
    %v1236 = vpack.c.b16 %v1032, %v1028
    %v1237 = vpack.c.b16 %v1033, %v1029
    %v1238 = vpack.c.b16 %v1034, %v1030
    %v1239 = vpack.c.b16 %v1035, %v1031
    %v1240 = vpack.c.b16 %v1040, %v1036
    %v1241 = vpack.c.b16 %v1041, %v1037
    %v1242 = vpack.c.b16 %v1042, %v1038
    %v1243 = vpack.c.b16 %v1043, %v1039
    %v1244 = vpack.c.b16 %v1048, %v1044
    %v1245 = vpack.c.b16 %v1049, %v1045
    %v1246 = vpack.c.b16 %v1050, %v1046
    %v1247 = vpack.c.b16 %v1051, %v1047
    %v1248 = vpack.c.b16 %v1056, %v1052
    %v1249 = vpack.c.b16 %v1057, %v1053
    %v1250 = vpack.c.b16 %v1058, %v1054
    %v1251 = vpack.c.b16 %v1059, %v1055
    %v1252 = vpack.c.b16 %v1064, %v1060
    %v1253 = vpack.c.b16 %v1065, %v1061
    %v1254 = vpack.c.b16 %v1066, %v1062
    %v1255 = vpack.c.b16 %v1067, %v1063
    %v1256 = vpack.c.b16 %v1072, %v1068
    %v1257 = vpack.c.b16 %v1073, %v1069
    %v1258 = vpack.c.b16 %v1074, %v1070
    %v1259 = vpack.c.b16 %v1075, %v1071
    %v1260 = vpack.c.b16 %v1080, %v1076
    %v1261 = vpack.c.b16 %v1081, %v1077
    %v1262 = vpack.c.b16 %v1082, %v1078
    %v1263 = vpack.c.b16 %v1083, %v1079
    %v1264 = vpack.c.b16 %v1088, %v1084
    %v1265 = vpack.c.b16 %v1089, %v1085
    %v1266 = vpack.c.b16 %v1090, %v1086
    %v1267 = vpack.c.b16 %v1091, %v1087
    %v1268 = vpack.c.b16 %v1096, %v1092
    %v1269 = vpack.c.b16 %v1097, %v1093
    %v1270 = vpack.c.b16 %v1098, %v1094
    %v1271 = vpack.c.b16 %v1099, %v1095
    %v1272 = vpack.c.b16 %v1104, %v1100
    %v1273 = vpack.c.b16 %v1105, %v1101
    %v1274 = vpack.c.b16 %v1106, %v1102
    %v1275 = vpack.c.b16 %v1107, %v1103
    %v1276 = vpack.c.b16 %v1112, %v1108
    %v1277 = vpack.c.b16 %v1113, %v1109
    %v1278 = vpack.c.b16 %v1114, %v1110
    %v1279 = vpack.c.b16 %v1115, %v1111
    %v1280 = vpack.c.b16 %v1120, %v1116
    %v1281 = vpack.c.b16 %v1121, %v1117
    %v1282 = vpack.c.b16 %v1122, %v1118
    %v1283 = vpack.c.b16 %v1123, %v1119
    %1444 = vmatprep.subr.bf16.mxu0 %v1153
    %1445 = vmatpush1.bf16.msra.mxu0 %v1152
    %1446 = vmatprep.subr.bf16.mxu0 %v1149
    %1447 = vmatpush1.bf16.msra.mxu0 %v1148
    %1448 = vmatprep.subr.bf16.mxu0 %v1145
    %1449 = vmatpush1.bf16.msra.mxu0 %v1144
    %1450 = vmatprep.subr.bf16.mxu0 %v1141
    %1451 = vmatpush1.bf16.msra.mxu0 %v1140
    %1452 = vmatprep.subr.bf16.mxu0 %v1137
    %1453 = vmatpush1.bf16.msra.mxu0 %v1136
    %1454 = vmatprep.subr.bf16.mxu0 %v1133
    %1455 = vmatpush1.bf16.msra.mxu0 %v1132
    %1456 = vmatprep.subr.bf16.mxu0 %v1129
    %1457 = vmatpush1.bf16.msra.mxu0 %v1128
    %1458 = vmatprep.subr.bf16.mxu0 %v1125
    %1459 = vmatpush1.bf16.msra.mxu0 %v1124
    %1460 = vmatprep.subr.bf16.mxu0 %v1185
    %1461 = vmatpush2.bf16.msra.mxu0 %v1184
    %1462 = vmatprep.subr.bf16.mxu0 %v1181
    %1463 = vmatpush2.bf16.msra.mxu0 %v1180
    %1464 = vmatprep.subr.bf16.mxu0 %v1177
    %1465 = vmatpush2.bf16.msra.mxu0 %v1176
    %1466 = vmatprep.subr.bf16.mxu0 %v1173
    %1467 = vmatpush2.bf16.msra.mxu0 %v1172
    %1468 = vmatprep.subr.bf16.mxu0 %v1169
    %1469 = vmatpush2.bf16.msra.mxu0 %v1168
    %1470 = vmatprep.subr.bf16.mxu0 %v1165
    %1471 = vmatpush2.bf16.msra.mxu0 %v1164
    %1472 = vmatprep.subr.bf16.mxu0 %v1161
    %1473 = vmatpush2.bf16.msra.mxu0 %v1160
    %1474 = vmatprep.subr.bf16.mxu0 %v1157
    %1475 = vmatpush2.bf16.msra.mxu0 %v1156
    %1476 = vmatprep.mubr.bf16.mxu0 %v443
    %1477 = vmatmul.mubr.bf16.gmra.mxu0 %v442
    %v1478 = vpop.f32.mrf.mxu0
    %v1479 = vadd.f32 %v627, %v1478
    %v1480 = vpop.f32.mrf.mxu0
    %v1481 = vadd.f32 %v631, %v1480
    %v1482 = vpop.f32.mrf.mxu0
    %v1483 = vadd.f32 %v627, %v1482
    %v1484 = vpop.f32.mrf.mxu0
    %v1485 = vadd.f32 %v631, %v1484
    %1486 = vmatprep.mubr.bf16.mxu0 %v448
    %1487 = vmatmul.mubr.bf16.gmra.mxu0 %v447
    %v1488 = vpop.f32.mrf.mxu0
    %v1489 = vadd.f32 %v627, %v1488
    %v1490 = vpop.f32.mrf.mxu0
    %v1491 = vadd.f32 %v631, %v1490
    %v1492 = vpop.f32.mrf.mxu0
    %v1493 = vadd.f32 %v627, %v1492
    %v1494 = vpop.f32.mrf.mxu0
    %v1495 = vadd.f32 %v631, %v1494
    %1496 = vmatprep.mubr.bf16.mxu0 %v453
    %1497 = vmatmul.mubr.bf16.gmra.mxu0 %v452
    %v1498 = vpop.f32.mrf.mxu0
    %v1499 = vadd.f32 %v627, %v1498
    %v1500 = vpop.f32.mrf.mxu0
    %v1501 = vadd.f32 %v631, %v1500
    %v1502 = vpop.f32.mrf.mxu0
    %v1503 = vadd.f32 %v627, %v1502
    %v1504 = vpop.f32.mrf.mxu0
    %v1505 = vadd.f32 %v631, %v1504
    %1506 = vmatprep.mubr.bf16.mxu0 %v458
    %1507 = vmatmul.mubr.bf16.gmra.mxu0 %v457
    %v1508 = vpop.f32.mrf.mxu0
    %v1509 = vadd.f32 %v627, %v1508
    %v1510 = vpop.f32.mrf.mxu0
    %v1511 = vadd.f32 %v631, %v1510
    %v1512 = vpop.f32.mrf.mxu0
    %v1513 = vadd.f32 %v627, %v1512
    %v1514 = vpop.f32.mrf.mxu0
    %v1515 = vadd.f32 %v631, %v1514
    %1516 = vdwg.mxu0
    %1517 = vmatprep.subr.bf16.mxu0 %v1217
    %1518 = vmatpush1.bf16.msra.mxu0 %v1216
    %1519 = vmatprep.subr.bf16.mxu0 %v1213
    %1520 = vmatpush1.bf16.msra.mxu0 %v1212
    %1521 = vmatprep.subr.bf16.mxu0 %v1209
    %1522 = vmatpush1.bf16.msra.mxu0 %v1208
    %1523 = vmatprep.subr.bf16.mxu0 %v1205
    %1524 = vmatpush1.bf16.msra.mxu0 %v1204
    %1525 = vmatprep.subr.bf16.mxu0 %v1201
    %1526 = vmatpush1.bf16.msra.mxu0 %v1200
    %1527 = vmatprep.subr.bf16.mxu0 %v1197
    %1528 = vmatpush1.bf16.msra.mxu0 %v1196
    %1529 = vmatprep.subr.bf16.mxu0 %v1193
    %1530 = vmatpush1.bf16.msra.mxu0 %v1192
    %1531 = vmatprep.subr.bf16.mxu0 %v1189
    %1532 = vmatpush1.bf16.msra.mxu0 %v1188
    %1533 = vmatprep.subr.bf16.mxu0 %v1249
    %1534 = vmatpush2.bf16.msra.mxu0 %v1248
    %1535 = vmatprep.subr.bf16.mxu0 %v1245
    %1536 = vmatpush2.bf16.msra.mxu0 %v1244
    %1537 = vmatprep.subr.bf16.mxu0 %v1241
    %1538 = vmatpush2.bf16.msra.mxu0 %v1240
    %1539 = vmatprep.subr.bf16.mxu0 %v1237
    %1540 = vmatpush2.bf16.msra.mxu0 %v1236
    %1541 = vmatprep.subr.bf16.mxu0 %v1233
    %1542 = vmatpush2.bf16.msra.mxu0 %v1232
    %1543 = vmatprep.subr.bf16.mxu0 %v1229
    %1544 = vmatpush2.bf16.msra.mxu0 %v1228
    %1545 = vmatprep.subr.bf16.mxu0 %v1225
    %1546 = vmatpush2.bf16.msra.mxu0 %v1224
    %1547 = vmatprep.subr.bf16.mxu0 %v1221
    %1548 = vmatpush2.bf16.msra.mxu0 %v1220
    %1549 = vmatprep.mubr.bf16.mxu0 %v445
    %1550 = vmatmul.mubr.bf16.gmra.mxu0 %v444
    %v1551 = vpop.f32.mrf.mxu0
    %v1552 = vadd.f32 %v1479, %v1551
    %v1553 = vpop.f32.mrf.mxu0
    %v1554 = vadd.f32 %v1481, %v1553
    %v1555 = vpop.f32.mrf.mxu0
    %v1556 = vadd.f32 %v1483, %v1555
    %v1557 = vpop.f32.mrf.mxu0
    %v1558 = vadd.f32 %v1485, %v1557
    %1559 = vmatprep.mubr.bf16.mxu0 %v450
    %1560 = vmatmul.mubr.bf16.gmra.mxu0 %v449
    %v1561 = vpop.f32.mrf.mxu0
    %v1562 = vadd.f32 %v1489, %v1561
    %v1563 = vpop.f32.mrf.mxu0
    %v1564 = vadd.f32 %v1491, %v1563
    %v1565 = vpop.f32.mrf.mxu0
    %v1566 = vadd.f32 %v1493, %v1565
    %v1567 = vpop.f32.mrf.mxu0
    %v1568 = vadd.f32 %v1495, %v1567
    %1569 = vmatprep.mubr.bf16.mxu0 %v455
    %1570 = vmatmul.mubr.bf16.gmra.mxu0 %v454
    %v1571 = vpop.f32.mrf.mxu0
    %v1572 = vadd.f32 %v1499, %v1571
    %v1573 = vpop.f32.mrf.mxu0
    %v1574 = vadd.f32 %v1501, %v1573
    %v1575 = vpop.f32.mrf.mxu0
    %v1576 = vadd.f32 %v1503, %v1575
    %v1577 = vpop.f32.mrf.mxu0
    %v1578 = vadd.f32 %v1505, %v1577
    %1579 = vmatprep.mubr.bf16.mxu0 %v460
    %1580 = vmatmul.mubr.bf16.gmra.mxu0 %v459
    %v1581 = vpop.f32.mrf.mxu0
    %v1582 = vadd.f32 %v1509, %v1581
    %v1583 = vpop.f32.mrf.mxu0
    %v1584 = vadd.f32 %v1511, %v1583
    %v1585 = vpop.f32.mrf.mxu0
    %v1586 = vadd.f32 %v1513, %v1585
    %v1587 = vpop.f32.mrf.mxu0
    %v1588 = vadd.f32 %v1515, %v1587
    %1589 = vdwg.mxu0
    %1590 = vmatprep.subr.bf16.mxu0 %v1281
    %1591 = vmatpush1.bf16.msra.mxu0 %v1280
    %1592 = vmatprep.subr.bf16.mxu0 %v1277
    %1593 = vmatpush1.bf16.msra.mxu0 %v1276
    %1594 = vmatprep.subr.bf16.mxu0 %v1273
    %1595 = vmatpush1.bf16.msra.mxu0 %v1272
    %1596 = vmatprep.subr.bf16.mxu0 %v1269
    %1597 = vmatpush1.bf16.msra.mxu0 %v1268
    %1598 = vmatprep.subr.bf16.mxu0 %v1265
    %1599 = vmatpush1.bf16.msra.mxu0 %v1264
    %1600 = vmatprep.subr.bf16.mxu0 %v1261
    %1601 = vmatpush1.bf16.msra.mxu0 %v1260
    %1602 = vmatprep.subr.bf16.mxu0 %v1257
    %1603 = vmatpush1.bf16.msra.mxu0 %v1256
    %1604 = vmatprep.subr.bf16.mxu0 %v1253
    %1605 = vmatpush1.bf16.msra.mxu0 %v1252
    %1606 = vmatprep.subr.bf16.mxu0 0
    %1607 = vmatpush2.bf16.msra.mxu0 0
    %1608 = vmatprep.subr.bf16.mxu0 0
    %1609 = vmatpush2.bf16.msra.mxu0 0
    %1610 = vmatprep.subr.bf16.mxu0 0
    %1611 = vmatpush2.bf16.msra.mxu0 0
    %1612 = vmatprep.subr.bf16.mxu0 0
    %1613 = vmatpush2.bf16.msra.mxu0 0
    %1614 = vmatprep.subr.bf16.mxu0 0
    %1615 = vmatpush2.bf16.msra.mxu0 0
    %1616 = vmatprep.subr.bf16.mxu0 0
    %1617 = vmatpush2.bf16.msra.mxu0 0
    %1618 = vmatprep.subr.bf16.mxu0 0
    %1619 = vmatpush2.bf16.msra.mxu0 0
    %1620 = vmatprep.subr.bf16.mxu0 0
    %1621 = vmatpush2.bf16.msra.mxu0 0
    %1622 = vmatprep.mubr.bf16.mxu0 0
    %1623 = vmatmul.mubr.bf16.gmra.mxu0 %v446
    %v1624 = vpop.f32.mrf.mxu0
    %v1625 = vadd.f32 %v1552, %v1624
    %v1626 = vpop.f32.mrf.mxu0
    %v1627 = vadd.f32 %v1554, %v1626
    %v1628 = vpop.f32.mrf.mxu0
    %v1629 = vadd.f32 %v1556, %v1628
    %v1630 = vpop.f32.mrf.mxu0
    %v1631 = vadd.f32 %v1558, %v1630
    %1632 = vmatprep.mubr.bf16.mxu0 0
    %1633 = vmatmul.mubr.bf16.gmra.mxu0 %v451
    %v1634 = vpop.f32.mrf.mxu0
    %v1635 = vadd.f32 %v1562, %v1634
    %v1636 = vpop.f32.mrf.mxu0
    %v1637 = vadd.f32 %v1564, %v1636
    %v1638 = vpop.f32.mrf.mxu0
    %v1639 = vadd.f32 %v1566, %v1638
    %v1640 = vpop.f32.mrf.mxu0
    %v1641 = vadd.f32 %v1568, %v1640
    %1642 = vmatprep.mubr.bf16.mxu0 0
    %1643 = vmatmul.mubr.bf16.gmra.mxu0 %v456
    %v1644 = vpop.f32.mrf.mxu0
    %v1645 = vadd.f32 %v1572, %v1644
    %v1646 = vpop.f32.mrf.mxu0
    %v1647 = vadd.f32 %v1574, %v1646
    %v1648 = vpop.f32.mrf.mxu0
    %v1649 = vadd.f32 %v1576, %v1648
    %v1650 = vpop.f32.mrf.mxu0
    %v1651 = vadd.f32 %v1578, %v1650
    %1652 = vmatprep.mubr.bf16.mxu0 0
    %1653 = vmatmul.mubr.bf16.gmra.mxu0 %v461
    %v1654 = vpop.f32.mrf.mxu0
    %v1655 = vadd.f32 %v1582, %v1654
    %v1656 = vpop.f32.mrf.mxu0
    %v1657 = vadd.f32 %v1584, %v1656
    %v1658 = vpop.f32.mrf.mxu0
    %v1659 = vadd.f32 %v1586, %v1658
    %v1660 = vpop.f32.mrf.mxu0
    %v1661 = vadd.f32 %v1588, %v1660
    %1662 = vdwg.mxu0
    %1663 = vmatprep.subr.bf16.mxu0 %v1155
    %1664 = vmatpush1.bf16.msra.mxu0 %v1154
    %1665 = vmatprep.subr.bf16.mxu0 %v1151
    %1666 = vmatpush1.bf16.msra.mxu0 %v1150
    %1667 = vmatprep.subr.bf16.mxu0 %v1147
    %1668 = vmatpush1.bf16.msra.mxu0 %v1146
    %1669 = vmatprep.subr.bf16.mxu0 %v1143
    %1670 = vmatpush1.bf16.msra.mxu0 %v1142
    %1671 = vmatprep.subr.bf16.mxu0 %v1139
    %1672 = vmatpush1.bf16.msra.mxu0 %v1138
    %1673 = vmatprep.subr.bf16.mxu0 %v1135
    %1674 = vmatpush1.bf16.msra.mxu0 %v1134
    %1675 = vmatprep.subr.bf16.mxu0 %v1131
    %1676 = vmatpush1.bf16.msra.mxu0 %v1130
    %1677 = vmatprep.subr.bf16.mxu0 %v1127
    %1678 = vmatpush1.bf16.msra.mxu0 %v1126
    %1679 = vmatprep.subr.bf16.mxu0 %v1187
    %1680 = vmatpush2.bf16.msra.mxu0 %v1186
    %1681 = vmatprep.subr.bf16.mxu0 %v1183
    %1682 = vmatpush2.bf16.msra.mxu0 %v1182
    %1683 = vmatprep.subr.bf16.mxu0 %v1179
    %1684 = vmatpush2.bf16.msra.mxu0 %v1178
    %1685 = vmatprep.subr.bf16.mxu0 %v1175
    %1686 = vmatpush2.bf16.msra.mxu0 %v1174
    %1687 = vmatprep.subr.bf16.mxu0 %v1171
    %1688 = vmatpush2.bf16.msra.mxu0 %v1170
    %1689 = vmatprep.subr.bf16.mxu0 %v1167
    %1690 = vmatpush2.bf16.msra.mxu0 %v1166
    %1691 = vmatprep.subr.bf16.mxu0 %v1163
    %1692 = vmatpush2.bf16.msra.mxu0 %v1162
    %1693 = vmatprep.subr.bf16.mxu0 %v1159
    %1694 = vmatpush2.bf16.msra.mxu0 %v1158
    %1695 = vmatprep.mubr.bf16.mxu0 %v443
    %1696 = vmatmul.mubr.bf16.gmra.mxu0 %v442
    %v1697 = vpop.f32.mrf.mxu0
    %v1698 = vadd.f32 %v635, %v1697
    %v1699 = vpop.f32.mrf.mxu0
    %v1700 = vadd.f32 %v639, %v1699
    %v1701 = vpop.f32.mrf.mxu0
    %v1702 = vadd.f32 %v635, %v1701
    %v1703 = vpop.f32.mrf.mxu0
    %v1704 = vadd.f32 %v639, %v1703
    %1705 = vmatprep.mubr.bf16.mxu0 %v448
    %1706 = vmatmul.mubr.bf16.gmra.mxu0 %v447
    %v1707 = vpop.f32.mrf.mxu0
    %v1708 = vadd.f32 %v635, %v1707
    %v1709 = vpop.f32.mrf.mxu0
    %v1710 = vadd.f32 %v639, %v1709
    %v1711 = vpop.f32.mrf.mxu0
    %v1712 = vadd.f32 %v635, %v1711
    %v1713 = vpop.f32.mrf.mxu0
    %v1714 = vadd.f32 %v639, %v1713
    %1715 = vmatprep.mubr.bf16.mxu0 %v453
    %1716 = vmatmul.mubr.bf16.gmra.mxu0 %v452
    %v1717 = vpop.f32.mrf.mxu0
    %v1718 = vadd.f32 %v635, %v1717
    %v1719 = vpop.f32.mrf.mxu0
    %v1720 = vadd.f32 %v639, %v1719
    %v1721 = vpop.f32.mrf.mxu0
    %v1722 = vadd.f32 %v635, %v1721
    %v1723 = vpop.f32.mrf.mxu0
    %v1724 = vadd.f32 %v639, %v1723
    %1725 = vmatprep.mubr.bf16.mxu0 %v458
    %1726 = vmatmul.mubr.bf16.gmra.mxu0 %v457
    %v1727 = vpop.f32.mrf.mxu0
    %v1728 = vadd.f32 %v635, %v1727
    %v1729 = vpop.f32.mrf.mxu0
    %v1730 = vadd.f32 %v639, %v1729
    %v1731 = vpop.f32.mrf.mxu0
    %v1732 = vadd.f32 %v635, %v1731
    %v1733 = vpop.f32.mrf.mxu0
    %v1734 = vadd.f32 %v639, %v1733
    %1735 = vdwg.mxu0
    %1736 = vmatprep.subr.bf16.mxu0 %v1219
    %1737 = vmatpush1.bf16.msra.mxu0 %v1218
    %1738 = vmatprep.subr.bf16.mxu0 %v1215
    %1739 = vmatpush1.bf16.msra.mxu0 %v1214
    %1740 = vmatprep.subr.bf16.mxu0 %v1211
    %1741 = vmatpush1.bf16.msra.mxu0 %v1210
    %1742 = vmatprep.subr.bf16.mxu0 %v1207
    %1743 = vmatpush1.bf16.msra.mxu0 %v1206
    %1744 = vmatprep.subr.bf16.mxu0 %v1203
    %1745 = vmatpush1.bf16.msra.mxu0 %v1202
    %1746 = vmatprep.subr.bf16.mxu0 %v1199
    %1747 = vmatpush1.bf16.msra.mxu0 %v1198
    %1748 = vmatprep.subr.bf16.mxu0 %v1195
    %1749 = vmatpush1.bf16.msra.mxu0 %v1194
    %1750 = vmatprep.subr.bf16.mxu0 %v1191
    %1751 = vmatpush1.bf16.msra.mxu0 %v1190
    %1752 = vmatprep.subr.bf16.mxu0 %v1251
    %1753 = vmatpush2.bf16.msra.mxu0 %v1250
    %1754 = vmatprep.subr.bf16.mxu0 %v1247
    %1755 = vmatpush2.bf16.msra.mxu0 %v1246
    %1756 = vmatprep.subr.bf16.mxu0 %v1243
    %1757 = vmatpush2.bf16.msra.mxu0 %v1242
    %1758 = vmatprep.subr.bf16.mxu0 %v1239
    %1759 = vmatpush2.bf16.msra.mxu0 %v1238
    %1760 = vmatprep.subr.bf16.mxu0 %v1235
    %1761 = vmatpush2.bf16.msra.mxu0 %v1234
    %1762 = vmatprep.subr.bf16.mxu0 %v1231
    %1763 = vmatpush2.bf16.msra.mxu0 %v1230
    %1764 = vmatprep.subr.bf16.mxu0 %v1227
    %1765 = vmatpush2.bf16.msra.mxu0 %v1226
    %1766 = vmatprep.subr.bf16.mxu0 %v1223
    %1767 = vmatpush2.bf16.msra.mxu0 %v1222
    %1768 = vmatprep.mubr.bf16.mxu0 %v445
    %1769 = vmatmul.mubr.bf16.gmra.mxu0 %v444
    %v1770 = vpop.f32.mrf.mxu0
    %v1771 = vadd.f32 %v1698, %v1770
    %v1772 = vpop.f32.mrf.mxu0
    %v1773 = vadd.f32 %v1700, %v1772
    %v1774 = vpop.f32.mrf.mxu0
    %v1775 = vadd.f32 %v1702, %v1774
    %v1776 = vpop.f32.mrf.mxu0
    %v1777 = vadd.f32 %v1704, %v1776
    %1778 = vmatprep.mubr.bf16.mxu0 %v450
    %1779 = vmatmul.mubr.bf16.gmra.mxu0 %v449
    %v1780 = vpop.f32.mrf.mxu0
    %v1781 = vadd.f32 %v1708, %v1780
    %v1782 = vpop.f32.mrf.mxu0
    %v1783 = vadd.f32 %v1710, %v1782
    %v1784 = vpop.f32.mrf.mxu0
    %v1785 = vadd.f32 %v1712, %v1784
    %v1786 = vpop.f32.mrf.mxu0
    %v1787 = vadd.f32 %v1714, %v1786
    %1788 = vmatprep.mubr.bf16.mxu0 %v455
    %1789 = vmatmul.mubr.bf16.gmra.mxu0 %v454
    %v1790 = vpop.f32.mrf.mxu0
    %v1791 = vadd.f32 %v1718, %v1790
    %v1792 = vpop.f32.mrf.mxu0
    %v1793 = vadd.f32 %v1720, %v1792
    %v1794 = vpop.f32.mrf.mxu0
    %v1795 = vadd.f32 %v1722, %v1794
    %v1796 = vpop.f32.mrf.mxu0
    %v1797 = vadd.f32 %v1724, %v1796
    %1798 = vmatprep.mubr.bf16.mxu0 %v460
    %1799 = vmatmul.mubr.bf16.gmra.mxu0 %v459
    %v1800 = vpop.f32.mrf.mxu0
    %v1801 = vadd.f32 %v1728, %v1800
    %v1802 = vpop.f32.mrf.mxu0
    %v1803 = vadd.f32 %v1730, %v1802
    %v1804 = vpop.f32.mrf.mxu0
    %v1805 = vadd.f32 %v1732, %v1804
    %v1806 = vpop.f32.mrf.mxu0
    %v1807 = vadd.f32 %v1734, %v1806
    %1808 = vdwg.mxu0
    %1809 = vmatprep.subr.bf16.mxu0 %v1283
    %1810 = vmatpush1.bf16.msra.mxu0 %v1282
    %1811 = vmatprep.subr.bf16.mxu0 %v1279
    %1812 = vmatpush1.bf16.msra.mxu0 %v1278
    %1813 = vmatprep.subr.bf16.mxu0 %v1275
    %1814 = vmatpush1.bf16.msra.mxu0 %v1274
    %1815 = vmatprep.subr.bf16.mxu0 %v1271
    %1816 = vmatpush1.bf16.msra.mxu0 %v1270
    %1817 = vmatprep.subr.bf16.mxu0 %v1267
    %1818 = vmatpush1.bf16.msra.mxu0 %v1266
    %1819 = vmatprep.subr.bf16.mxu0 %v1263
    %1820 = vmatpush1.bf16.msra.mxu0 %v1262
    %1821 = vmatprep.subr.bf16.mxu0 %v1259
    %1822 = vmatpush1.bf16.msra.mxu0 %v1258
    %1823 = vmatprep.subr.bf16.mxu0 %v1255
    %1824 = vmatpush1.bf16.msra.mxu0 %v1254
    %1825 = vmatprep.subr.bf16.mxu0 0
    %1826 = vmatpush2.bf16.msra.mxu0 0
    %1827 = vmatprep.subr.bf16.mxu0 0
    %1828 = vmatpush2.bf16.msra.mxu0 0
    %1829 = vmatprep.subr.bf16.mxu0 0
    %1830 = vmatpush2.bf16.msra.mxu0 0
    %1831 = vmatprep.subr.bf16.mxu0 0
    %1832 = vmatpush2.bf16.msra.mxu0 0
    %1833 = vmatprep.subr.bf16.mxu0 0
    %1834 = vmatpush2.bf16.msra.mxu0 0
    %1835 = vmatprep.subr.bf16.mxu0 0
    %1836 = vmatpush2.bf16.msra.mxu0 0
    %1837 = vmatprep.subr.bf16.mxu0 0
    %1838 = vmatpush2.bf16.msra.mxu0 0
    %1839 = vmatprep.subr.bf16.mxu0 0
    %1840 = vmatpush2.bf16.msra.mxu0 0
    %1841 = vmatprep.mubr.bf16.mxu0 0
    %1842 = vmatmul.mubr.bf16.gmra.mxu0 %v446
    %v1843 = vpop.f32.mrf.mxu0
    %v1844 = vadd.f32 %v1771, %v1843
    %v1845 = vpop.f32.mrf.mxu0
    %v1846 = vadd.f32 %v1773, %v1845
    %v1847 = vpop.f32.mrf.mxu0
    %v1848 = vadd.f32 %v1775, %v1847
    %v1849 = vpop.f32.mrf.mxu0
    %v1850 = vadd.f32 %v1777, %v1849
    %1851 = vmatprep.mubr.bf16.mxu0 0
    %1852 = vmatmul.mubr.bf16.gmra.mxu0 %v451
    %v1853 = vpop.f32.mrf.mxu0
    %v1854 = vadd.f32 %v1781, %v1853
    %v1855 = vpop.f32.mrf.mxu0
    %v1856 = vadd.f32 %v1783, %v1855
    %v1857 = vpop.f32.mrf.mxu0
    %v1858 = vadd.f32 %v1785, %v1857
    %v1859 = vpop.f32.mrf.mxu0
    %v1860 = vadd.f32 %v1787, %v1859
    %1861 = vmatprep.mubr.bf16.mxu0 0
    %1862 = vmatmul.mubr.bf16.gmra.mxu0 %v456
    %v1863 = vpop.f32.mrf.mxu0
    %v1864 = vadd.f32 %v1791, %v1863
    %v1865 = vpop.f32.mrf.mxu0
    %v1866 = vadd.f32 %v1793, %v1865
    %v1867 = vpop.f32.mrf.mxu0
    %v1868 = vadd.f32 %v1795, %v1867
    %v1869 = vpop.f32.mrf.mxu0
    %v1870 = vadd.f32 %v1797, %v1869
    %1871 = vmatprep.mubr.bf16.mxu0 0
    %1872 = vmatmul.mubr.bf16.gmra.mxu0 %v461
    %v1873 = vpop.f32.mrf.mxu0
    %v1874 = vadd.f32 %v1801, %v1873
    %v1875 = vpop.f32.mrf.mxu0
    %v1876 = vadd.f32 %v1803, %v1875
    %v1877 = vpop.f32.mrf.mxu0
    %v1878 = vadd.f32 %v1805, %v1877
    %v1879 = vpop.f32.mrf.mxu0
    %v1880 = vadd.f32 %v1807, %v1879
    %1881 = vdwg.mxu0
    %v1882 = vmax.f32 %v1625, 0.0
    %v1883 = vmax.f32 %v1627, 0.0
    %v1884 = vmax.f32 %v1844, 0.0
    %v1885 = vmax.f32 %v1846, 0.0
    %v1886 = vmax.f32 %v1629, 0.0
    %v1887 = vmax.f32 %v1631, 0.0
    %v1888 = vmax.f32 %v1848, 0.0
    %v1889 = vmax.f32 %v1850, 0.0
    %v1890 = vmax.f32 %v1635, 0.0
    %v1891 = vmax.f32 %v1637, 0.0
    %v1892 = vmax.f32 %v1854, 0.0
    %v1893 = vmax.f32 %v1856, 0.0
    %v1894 = vmax.f32 %v1639, 0.0
    %v1895 = vmax.f32 %v1641, 0.0
    %v1896 = vmax.f32 %v1858, 0.0
    %v1897 = vmax.f32 %v1860, 0.0
    %v1898 = vmax.f32 %v1645, 0.0
    %v1899 = vmax.f32 %v1647, 0.0
    %v1900 = vmax.f32 %v1864, 0.0
    %v1901 = vmax.f32 %v1866, 0.0
    %v1902 = vmax.f32 %v1649, 0.0
    %v1903 = vmax.f32 %v1651, 0.0
    %v1904 = vmax.f32 %v1868, 0.0
    %v1905 = vmax.f32 %v1870, 0.0
    %v1906 = vmax.f32 %v1655, 0.0
    %v1907 = vmax.f32 %v1657, 0.0
    %v1908 = vmax.f32 %v1874, 0.0
    %v1909 = vmax.f32 %v1876, 0.0
    %v1910 = vmax.f32 %v1659, 0.0
    %v1911 = vmax.f32 %v1661, 0.0
    %v1912 = vmax.f32 %v1878, 0.0
    %v1913 = vmax.f32 %v1880, 0.0
    %v1914 = vpack.c.bf16 %v1886, %v1882
    %v1915 = vpack.c.bf16 %v1887, %v1883
    %v1916 = vpack.c.bf16 %v1888, %v1884
    %v1917 = vpack.c.bf16 %v1889, %v1885
    %v1918 = vpack.c.bf16 %v1894, %v1890
    %v1919 = vpack.c.bf16 %v1895, %v1891
    %v1920 = vpack.c.bf16 %v1896, %v1892
    %v1921 = vpack.c.bf16 %v1897, %v1893
    %v1922 = vpack.c.bf16 %v1902, %v1898
    %v1923 = vpack.c.bf16 %v1903, %v1899
    %v1924 = vpack.c.bf16 %v1904, %v1900
    %v1925 = vpack.c.bf16 %v1905, %v1901
    %v1926 = vpack.c.bf16 %v1910, %v1906
    %v1927 = vpack.c.bf16 %v1911, %v1907
    %v1928 = vpack.c.bf16 %v1912, %v1908
    %v1929 = vpack.c.bf16 %v1913, %v1909
    %v1930 = vld [vmem:[#allocation5] sm:$0xff]
    %v1931 = vld [vmem:[#allocation5 + $0x8] sm:$0xff]
    %v1932 = vld [vmem:[#allocation5 + $0x10] sm:$0xff]
    %v1933 = vld [vmem:[#allocation5 + $0x18] sm:$0xff]
    %v1934 = vld [vmem:[#allocation5 + $0x20] sm:$0xff]
    %v1935 = vld [vmem:[#allocation5 + $0x28] sm:$0xff]
    %v1936 = vld [vmem:[#allocation5 + $0x30] sm:$0xff]
    %v1937 = vld [vmem:[#allocation5 + $0x38] sm:$0xff]
    %v1938 = vld [vmem:[#allocation5 + $0x40] sm:$0xff]
    %v1939 = vld [vmem:[#allocation5 + $0x48] sm:$0xff]
    %v1940 = vld [vmem:[#allocation5 + $0x50] sm:$0xff]
    %v1941 = vld [vmem:[#allocation5 + $0x58] sm:$0xff]
    %v1942 = vld [vmem:[#allocation5 + $0x60] sm:$0xff]
    %v1943 = vld [vmem:[#allocation5 + $0x68] sm:$0xff]
    %v1944 = vld [vmem:[#allocation5 + $0x70] sm:$0xff]
    %v1945 = vld [vmem:[#allocation5 + $0x78] sm:$0xff]
    %v1946 = vld [vmem:[#allocation5 + $0x80] sm:$0xff]
    %v1947 = vld [vmem:[#allocation5 + $0x88] sm:$0xff]
    %v1948 = vld [vmem:[#allocation5 + $0x90] sm:$0xff]
    %v1949 = vld [vmem:[#allocation5 + $0x98] sm:$0xff]
    %v1950 = vld [vmem:[#allocation5 + $0xa0] sm:$0xff]
    %v1951 = vld [vmem:[#allocation5 + $0xa8] sm:$0xff]
    %v1952 = vld [vmem:[#allocation5 + $0xb0] sm:$0xff]
    %v1953 = vld [vmem:[#allocation5 + $0xb8] sm:$0xff]
    %v1954 = vld [vmem:[#allocation5 + $0xc0] sm:$0xff]
    %v1955 = vld [vmem:[#allocation5 + $0xc8] sm:$0xff]
    %v1956 = vld [vmem:[#allocation5 + $0xd0] sm:$0xff]
    %v1957 = vld [vmem:[#allocation5 + $0xd8] sm:$0xff]
    %v1958 = vld [vmem:[#allocation5 + $0xe0] sm:$0xff]
    %v1959 = vld [vmem:[#allocation5 + $0xe8] sm:$0xff]
    %v1960 = vld [vmem:[#allocation5 + $0xf0] sm:$0xff]
    %v1961 = vld [vmem:[#allocation5 + $0xf8] sm:$0xff]
    %v1962 = vld [vmem:[#allocation5 + $0x100] sm:$0xff]
    %v1963 = vld [vmem:[#allocation5 + $0x108] sm:$0xff]
    %v1964 = vld [vmem:[#allocation5 + $0x110] sm:$0xff]
    %v1965 = vld [vmem:[#allocation5 + $0x118] sm:$0xff]
    %v1966 = vld [vmem:[#allocation5 + $0x120] sm:$0xff]
    %v1967 = vld [vmem:[#allocation5 + $0x128] sm:$0xff]
    %v1968 = vld [vmem:[#allocation5 + $0x130] sm:$0xff]
    %v1969 = vld [vmem:[#allocation5 + $0x138] sm:$0xff]
    %v1970 = vld [vmem:[#allocation5 + $0x140] sm:$0xff]
    %v1971 = vld [vmem:[#allocation5 + $0x148] sm:$0xff]
    %v1972 = vld [vmem:[#allocation5 + $0x150] sm:$0xff]
    %v1973 = vld [vmem:[#allocation5 + $0x158] sm:$0xff]
    %v1974 = vld [vmem:[#allocation5 + $0x160] sm:$0xff]
    %v1975 = vld [vmem:[#allocation5 + $0x168] sm:$0xff]
    %v1976 = vld [vmem:[#allocation5 + $0x170] sm:$0xff]
    %v1977 = vld [vmem:[#allocation5 + $0x178] sm:$0xff]
    %v1978 = vld [vmem:[#allocation5 + $0x180] sm:$0xff]
    %v1979 = vld [vmem:[#allocation5 + $0x188] sm:$0xff]
    %v1980 = vld [vmem:[#allocation5 + $0x190] sm:$0xff]
    %v1981 = vld [vmem:[#allocation5 + $0x198] sm:$0xff]
    %v1982 = vld [vmem:[#allocation5 + $0x1a0] sm:$0xff]
    %v1983 = vld [vmem:[#allocation5 + $0x1a8] sm:$0xff]
    %v1984 = vld [vmem:[#allocation5 + $0x1b0] sm:$0xff]
    %v1985 = vld [vmem:[#allocation5 + $0x1b8] sm:$0xff]
    %v1986 = vld [vmem:[#allocation5 + $0x1c0] sm:$0xff]
    %v1987 = vld [vmem:[#allocation5 + $0x1c8] sm:$0xff]
    %v1988 = vld [vmem:[#allocation5 + $0x1d0] sm:$0xff]
    %v1989 = vld [vmem:[#allocation5 + $0x1d8] sm:$0xff]
    %v1990 = vld [vmem:[#allocation5 + $0x1e0] sm:$0xff]
    %v1991 = vld [vmem:[#allocation5 + $0x1e8] sm:$0xff]
    %v1992 = vld [vmem:[#allocation5 + $0x1f0] sm:$0xff]
    %v1993 = vld [vmem:[#allocation5 + $0x1f8] sm:$0xff]
    %v1994 = vld [vmem:[%s6] sm:$0x3]
    %v1996 = vlaneseq
    %v1997 = vshrl.u32 %v1996, 7
    %v1998 = vsub.s32 0, %v1997
    %v1999 = vrot.slane %v1994, %v1998
    %v2000 = vlaneseq
    %v2001 = vshrl.u32 %v2000, 7
    %v2002 = vsub.s32 1, %v2001
    %v2003 = vrot.slane %v1994, %v2002
    %v2070 = vunpack.c.l.b16 %v1930
    %v2071 = vunpack.c.h.b16 %v1930
    %v2072 = vunpack.c.l.b16 %v1931
    %v2073 = vunpack.c.h.b16 %v1931
    %v2074 = vunpack.c.l.b16 %v1932
    %v2075 = vunpack.c.h.b16 %v1932
    %v2076 = vunpack.c.l.b16 %v1933
    %v2077 = vunpack.c.h.b16 %v1933
    %v2078 = vunpack.c.l.b16 %v1934
    %v2079 = vunpack.c.h.b16 %v1934
    %v2080 = vunpack.c.l.b16 %v1935
    %v2081 = vunpack.c.h.b16 %v1935
    %v2082 = vunpack.c.l.b16 %v1936
    %v2083 = vunpack.c.h.b16 %v1936
    %v2084 = vunpack.c.l.b16 %v1937
    %v2085 = vunpack.c.h.b16 %v1937
    %v2086 = vunpack.c.l.b16 %v1938
    %v2087 = vunpack.c.h.b16 %v1938
    %v2088 = vunpack.c.l.b16 %v1939
    %v2089 = vunpack.c.h.b16 %v1939
    %v2090 = vunpack.c.l.b16 %v1940
    %v2091 = vunpack.c.h.b16 %v1940
    %v2092 = vunpack.c.l.b16 %v1941
    %v2093 = vunpack.c.h.b16 %v1941
    %v2094 = vunpack.c.l.b16 %v1942
    %v2095 = vunpack.c.h.b16 %v1942
    %v2096 = vunpack.c.l.b16 %v1943
    %v2097 = vunpack.c.h.b16 %v1943
    %v2098 = vunpack.c.l.b16 %v1944
    %v2099 = vunpack.c.h.b16 %v1944
    %v2100 = vunpack.c.l.b16 %v1945
    %v2101 = vunpack.c.h.b16 %v1945
    %v2102 = vunpack.c.l.b16 %v1946
    %v2103 = vunpack.c.h.b16 %v1946
    %v2104 = vunpack.c.l.b16 %v1947
    %v2105 = vunpack.c.h.b16 %v1947
    %v2106 = vunpack.c.l.b16 %v1948
    %v2107 = vunpack.c.h.b16 %v1948
    %v2108 = vunpack.c.l.b16 %v1949
    %v2109 = vunpack.c.h.b16 %v1949
    %v2110 = vunpack.c.l.b16 %v1950
    %v2111 = vunpack.c.h.b16 %v1950
    %v2112 = vunpack.c.l.b16 %v1951
    %v2113 = vunpack.c.h.b16 %v1951
    %v2114 = vunpack.c.l.b16 %v1952
    %v2115 = vunpack.c.h.b16 %v1952
    %v2116 = vunpack.c.l.b16 %v1953
    %v2117 = vunpack.c.h.b16 %v1953
    %v2118 = vunpack.c.l.b16 %v1954
    %v2119 = vunpack.c.h.b16 %v1954
    %v2120 = vunpack.c.l.b16 %v1955
    %v2121 = vunpack.c.h.b16 %v1955
    %v2122 = vunpack.c.l.b16 %v1956
    %v2123 = vunpack.c.h.b16 %v1956
    %v2124 = vunpack.c.l.b16 %v1957
    %v2125 = vunpack.c.h.b16 %v1957
    %v2126 = vunpack.c.l.b16 %v1958
    %v2127 = vunpack.c.h.b16 %v1958
    %v2128 = vunpack.c.l.b16 %v1959
    %v2129 = vunpack.c.h.b16 %v1959
    %v2130 = vunpack.c.l.b16 %v1960
    %v2131 = vunpack.c.h.b16 %v1960
    %v2132 = vunpack.c.l.b16 %v1961
    %v2133 = vunpack.c.h.b16 %v1961
    %v2134 = vunpack.c.l.b16 %v1962
    %v2135 = vunpack.c.h.b16 %v1962
    %v2136 = vunpack.c.l.b16 %v1963
    %v2137 = vunpack.c.h.b16 %v1963
    %v2138 = vunpack.c.l.b16 %v1964
    %v2139 = vunpack.c.h.b16 %v1964
    %v2140 = vunpack.c.l.b16 %v1965
    %v2141 = vunpack.c.h.b16 %v1965
    %v2142 = vunpack.c.l.b16 %v1966
    %v2143 = vunpack.c.h.b16 %v1966
    %v2144 = vunpack.c.l.b16 %v1967
    %v2145 = vunpack.c.h.b16 %v1967
    %v2146 = vunpack.c.l.b16 %v1968
    %v2147 = vunpack.c.h.b16 %v1968
    %v2148 = vunpack.c.l.b16 %v1969
    %v2149 = vunpack.c.h.b16 %v1969
    %v2150 = vunpack.c.l.b16 %v1970
    %v2151 = vunpack.c.h.b16 %v1970
    %v2152 = vunpack.c.l.b16 %v1971
    %v2153 = vunpack.c.h.b16 %v1971
    %v2154 = vunpack.c.l.b16 %v1972
    %v2155 = vunpack.c.h.b16 %v1972
    %v2156 = vunpack.c.l.b16 %v1973
    %v2157 = vunpack.c.h.b16 %v1973
    %v2158 = vunpack.c.l.b16 %v1974
    %v2159 = vunpack.c.h.b16 %v1974
    %v2160 = vunpack.c.l.b16 %v1975
    %v2161 = vunpack.c.h.b16 %v1975
    %v2162 = vunpack.c.l.b16 %v1976
    %v2163 = vunpack.c.h.b16 %v1976
    %v2164 = vunpack.c.l.b16 %v1977
    %v2165 = vunpack.c.h.b16 %v1977
    %v2166 = vunpack.c.l.b16 %v1978
    %v2167 = vunpack.c.h.b16 %v1978
    %v2168 = vunpack.c.l.b16 %v1979
    %v2169 = vunpack.c.h.b16 %v1979
    %v2170 = vunpack.c.l.b16 %v1980
    %v2171 = vunpack.c.h.b16 %v1980
    %v2172 = vunpack.c.l.b16 %v1981
    %v2173 = vunpack.c.h.b16 %v1981
    %v2174 = vunpack.c.l.b16 %v1982
    %v2175 = vunpack.c.h.b16 %v1982
    %v2176 = vunpack.c.l.b16 %v1983
    %v2177 = vunpack.c.h.b16 %v1983
    %v2178 = vunpack.c.l.b16 %v1984
    %v2179 = vunpack.c.h.b16 %v1984
    %v2180 = vunpack.c.l.b16 %v1985
    %v2181 = vunpack.c.h.b16 %v1985
    %v2182 = vunpack.c.l.b16 %v1986
    %v2183 = vunpack.c.h.b16 %v1986
    %v2184 = vunpack.c.l.b16 %v1987
    %v2185 = vunpack.c.h.b16 %v1987
    %v2186 = vunpack.c.l.b16 %v1988
    %v2187 = vunpack.c.h.b16 %v1988
    %v2188 = vunpack.c.l.b16 %v1989
    %v2189 = vunpack.c.h.b16 %v1989
    %v2190 = vunpack.c.l.b16 %v1990
    %v2191 = vunpack.c.h.b16 %v1990
    %v2192 = vunpack.c.l.b16 %v1991
    %v2193 = vunpack.c.h.b16 %v1991
    %v2194 = vunpack.c.l.b16 %v1992
    %v2195 = vunpack.c.h.b16 %v1992
    %v2196 = vunpack.c.l.b16 %v1993
    %v2197 = vunpack.c.h.b16 %v1993
    %v2198 = vpack.c.b16 %v2072, %v2070
    %v2199 = vpack.c.b16 %v2073, %v2071
    %v2200 = vpack.c.b16 %v2076, %v2074
    %v2201 = vpack.c.b16 %v2077, %v2075
    %v2202 = vpack.c.b16 %v2080, %v2078
    %v2203 = vpack.c.b16 %v2081, %v2079
    %v2204 = vpack.c.b16 %v2084, %v2082
    %v2205 = vpack.c.b16 %v2085, %v2083
    %v2206 = vpack.c.b16 %v2088, %v2086
    %v2207 = vpack.c.b16 %v2089, %v2087
    %v2208 = vpack.c.b16 %v2092, %v2090
    %v2209 = vpack.c.b16 %v2093, %v2091
    %v2210 = vpack.c.b16 %v2096, %v2094
    %v2211 = vpack.c.b16 %v2097, %v2095
    %v2212 = vpack.c.b16 %v2100, %v2098
    %v2213 = vpack.c.b16 %v2101, %v2099
    %v2214 = vpack.c.b16 %v2104, %v2102
    %v2215 = vpack.c.b16 %v2105, %v2103
    %v2216 = vpack.c.b16 %v2108, %v2106
    %v2217 = vpack.c.b16 %v2109, %v2107
    %v2218 = vpack.c.b16 %v2112, %v2110
    %v2219 = vpack.c.b16 %v2113, %v2111
    %v2220 = vpack.c.b16 %v2116, %v2114
    %v2221 = vpack.c.b16 %v2117, %v2115
    %v2222 = vpack.c.b16 %v2120, %v2118
    %v2223 = vpack.c.b16 %v2121, %v2119
    %v2224 = vpack.c.b16 %v2124, %v2122
    %v2225 = vpack.c.b16 %v2125, %v2123
    %v2226 = vpack.c.b16 %v2128, %v2126
    %v2227 = vpack.c.b16 %v2129, %v2127
    %v2228 = vpack.c.b16 %v2132, %v2130
    %v2229 = vpack.c.b16 %v2133, %v2131
    %v2230 = vpack.c.b16 %v2136, %v2134
    %v2231 = vpack.c.b16 %v2137, %v2135
    %v2232 = vpack.c.b16 %v2140, %v2138
    %v2233 = vpack.c.b16 %v2141, %v2139
    %v2234 = vpack.c.b16 %v2144, %v2142
    %v2235 = vpack.c.b16 %v2145, %v2143
    %v2236 = vpack.c.b16 %v2148, %v2146
    %v2237 = vpack.c.b16 %v2149, %v2147
    %v2238 = vpack.c.b16 %v2152, %v2150
    %v2239 = vpack.c.b16 %v2153, %v2151
    %v2240 = vpack.c.b16 %v2156, %v2154
    %v2241 = vpack.c.b16 %v2157, %v2155
    %v2242 = vpack.c.b16 %v2160, %v2158
    %v2243 = vpack.c.b16 %v2161, %v2159
    %v2244 = vpack.c.b16 %v2164, %v2162
    %v2245 = vpack.c.b16 %v2165, %v2163
    %v2246 = vpack.c.b16 %v2168, %v2166
    %v2247 = vpack.c.b16 %v2169, %v2167
    %v2248 = vpack.c.b16 %v2172, %v2170
    %v2249 = vpack.c.b16 %v2173, %v2171
    %v2250 = vpack.c.b16 %v2176, %v2174
    %v2251 = vpack.c.b16 %v2177, %v2175
    %v2252 = vpack.c.b16 %v2180, %v2178
    %v2253 = vpack.c.b16 %v2181, %v2179
    %v2254 = vpack.c.b16 %v2184, %v2182
    %v2255 = vpack.c.b16 %v2185, %v2183
    %v2256 = vpack.c.b16 %v2188, %v2186
    %v2257 = vpack.c.b16 %v2189, %v2187
    %v2258 = vpack.c.b16 %v2192, %v2190
    %v2259 = vpack.c.b16 %v2193, %v2191
    %v2260 = vpack.c.b16 %v2196, %v2194
    %v2261 = vpack.c.b16 %v2197, %v2195
    %2326 = vmatprep.subr.bf16.mxu0 %v2213
    %2327 = vmatpush1.bf16.msra.mxu0 %v2212
    %2328 = vmatprep.subr.bf16.mxu0 %v2211
    %2329 = vmatpush1.bf16.msra.mxu0 %v2210
    %2330 = vmatprep.subr.bf16.mxu0 %v2209
    %2331 = vmatpush1.bf16.msra.mxu0 %v2208
    %2332 = vmatprep.subr.bf16.mxu0 %v2207
    %2333 = vmatpush1.bf16.msra.mxu0 %v2206
    %2334 = vmatprep.subr.bf16.mxu0 %v2205
    %2335 = vmatpush1.bf16.msra.mxu0 %v2204
    %2336 = vmatprep.subr.bf16.mxu0 %v2203
    %2337 = vmatpush1.bf16.msra.mxu0 %v2202
    %2338 = vmatprep.subr.bf16.mxu0 %v2201
    %2339 = vmatpush1.bf16.msra.mxu0 %v2200
    %2340 = vmatprep.subr.bf16.mxu0 %v2199
    %2341 = vmatpush1.bf16.msra.mxu0 %v2198
    %2342 = vmatprep.subr.bf16.mxu0 %v2229
    %2343 = vmatpush2.bf16.msra.mxu0 %v2228
    %2344 = vmatprep.subr.bf16.mxu0 %v2227
    %2345 = vmatpush2.bf16.msra.mxu0 %v2226
    %2346 = vmatprep.subr.bf16.mxu0 %v2225
    %2347 = vmatpush2.bf16.msra.mxu0 %v2224
    %2348 = vmatprep.subr.bf16.mxu0 %v2223
    %2349 = vmatpush2.bf16.msra.mxu0 %v2222
    %2350 = vmatprep.subr.bf16.mxu0 %v2221
    %2351 = vmatpush2.bf16.msra.mxu0 %v2220
    %2352 = vmatprep.subr.bf16.mxu0 %v2219
    %2353 = vmatpush2.bf16.msra.mxu0 %v2218
    %2354 = vmatprep.subr.bf16.mxu0 %v2217
    %2355 = vmatpush2.bf16.msra.mxu0 %v2216
    %2356 = vmatprep.subr.bf16.mxu0 %v2215
    %2357 = vmatpush2.bf16.msra.mxu0 %v2214
    %2358 = vmatprep.mubr.bf16.mxu0 %v1915
    %2359 = vmatmul.mubr.bf16.gmra.mxu0 %v1914
    %v2360 = vpop.f32.mrf.mxu0
    %v2361 = vadd.f32 %v1999, %v2360
    %v2362 = vpop.f32.mrf.mxu0
    %v2363 = vadd.f32 %v2003, %v2362
    %v2364 = vpop.f32.mrf.mxu0
    %v2365 = vadd.f32 %v1999, %v2364
    %v2366 = vpop.f32.mrf.mxu0
    %v2367 = vadd.f32 %v2003, %v2366
    %2368 = vmatprep.mubr.bf16.mxu0 %v1919
    %2369 = vmatmul.mubr.bf16.gmra.mxu0 %v1918
    %v2370 = vpop.f32.mrf.mxu0
    %v2371 = vadd.f32 %v1999, %v2370
    %v2372 = vpop.f32.mrf.mxu0
    %v2373 = vadd.f32 %v2003, %v2372
    %v2374 = vpop.f32.mrf.mxu0
    %v2375 = vadd.f32 %v1999, %v2374
    %v2376 = vpop.f32.mrf.mxu0
    %v2377 = vadd.f32 %v2003, %v2376
    %2378 = vmatprep.mubr.bf16.mxu0 %v1923
    %2379 = vmatmul.mubr.bf16.gmra.mxu0 %v1922
    %v2380 = vpop.f32.mrf.mxu0
    %v2381 = vadd.f32 %v1999, %v2380
    %v2382 = vpop.f32.mrf.mxu0
    %v2383 = vadd.f32 %v2003, %v2382
    %v2384 = vpop.f32.mrf.mxu0
    %v2385 = vadd.f32 %v1999, %v2384
    %v2386 = vpop.f32.mrf.mxu0
    %v2387 = vadd.f32 %v2003, %v2386
    %2388 = vmatprep.mubr.bf16.mxu0 %v1927
    %2389 = vmatmul.mubr.bf16.gmra.mxu0 %v1926
    %v2390 = vpop.f32.mrf.mxu0
    %v2391 = vadd.f32 %v1999, %v2390
    %v2392 = vpop.f32.mrf.mxu0
    %v2393 = vadd.f32 %v2003, %v2392
    %v2394 = vpop.f32.mrf.mxu0
    %v2395 = vadd.f32 %v1999, %v2394
    %v2396 = vpop.f32.mrf.mxu0
    %v2397 = vadd.f32 %v2003, %v2396
    %2398 = vdwg.mxu0
    %2399 = vmatprep.subr.bf16.mxu0 %v2245
    %2400 = vmatpush1.bf16.msra.mxu0 %v2244
    %2401 = vmatprep.subr.bf16.mxu0 %v2243
    %2402 = vmatpush1.bf16.msra.mxu0 %v2242
    %2403 = vmatprep.subr.bf16.mxu0 %v2241
    %2404 = vmatpush1.bf16.msra.mxu0 %v2240
    %2405 = vmatprep.subr.bf16.mxu0 %v2239
    %2406 = vmatpush1.bf16.msra.mxu0 %v2238
    %2407 = vmatprep.subr.bf16.mxu0 %v2237
    %2408 = vmatpush1.bf16.msra.mxu0 %v2236
    %2409 = vmatprep.subr.bf16.mxu0 %v2235
    %2410 = vmatpush1.bf16.msra.mxu0 %v2234
    %2411 = vmatprep.subr.bf16.mxu0 %v2233
    %2412 = vmatpush1.bf16.msra.mxu0 %v2232
    %2413 = vmatprep.subr.bf16.mxu0 %v2231
    %2414 = vmatpush1.bf16.msra.mxu0 %v2230
    %2415 = vmatprep.subr.bf16.mxu0 %v2261
    %2416 = vmatpush2.bf16.msra.mxu0 %v2260
    %2417 = vmatprep.subr.bf16.mxu0 %v2259
    %2418 = vmatpush2.bf16.msra.mxu0 %v2258
    %2419 = vmatprep.subr.bf16.mxu0 %v2257
    %2420 = vmatpush2.bf16.msra.mxu0 %v2256
    %2421 = vmatprep.subr.bf16.mxu0 %v2255
    %2422 = vmatpush2.bf16.msra.mxu0 %v2254
    %2423 = vmatprep.subr.bf16.mxu0 %v2253
    %2424 = vmatpush2.bf16.msra.mxu0 %v2252
    %2425 = vmatprep.subr.bf16.mxu0 %v2251
    %2426 = vmatpush2.bf16.msra.mxu0 %v2250
    %2427 = vmatprep.subr.bf16.mxu0 %v2249
    %2428 = vmatpush2.bf16.msra.mxu0 %v2248
    %2429 = vmatprep.subr.bf16.mxu0 %v2247
    %2430 = vmatpush2.bf16.msra.mxu0 %v2246
    %2431 = vmatprep.mubr.bf16.mxu0 %v1917
    %2432 = vmatmul.mubr.bf16.gmra.mxu0 %v1916
    %v2433 = vpop.f32.mrf.mxu0
    %v2434 = vadd.f32 %v2361, %v2433
    %v2435 = vpop.f32.mrf.mxu0
    %v2436 = vadd.f32 %v2363, %v2435
    %v2437 = vpop.f32.mrf.mxu0
    %v2438 = vadd.f32 %v2365, %v2437
    %v2439 = vpop.f32.mrf.mxu0
    %v2440 = vadd.f32 %v2367, %v2439
    %2441 = vmatprep.mubr.bf16.mxu0 %v1921
    %2442 = vmatmul.mubr.bf16.gmra.mxu0 %v1920
    %v2443 = vpop.f32.mrf.mxu0
    %v2444 = vadd.f32 %v2371, %v2443
    %v2445 = vpop.f32.mrf.mxu0
    %v2446 = vadd.f32 %v2373, %v2445
    %v2447 = vpop.f32.mrf.mxu0
    %v2448 = vadd.f32 %v2375, %v2447
    %v2449 = vpop.f32.mrf.mxu0
    %v2450 = vadd.f32 %v2377, %v2449
    %2451 = vmatprep.mubr.bf16.mxu0 %v1925
    %2452 = vmatmul.mubr.bf16.gmra.mxu0 %v1924
    %v2453 = vpop.f32.mrf.mxu0
    %v2454 = vadd.f32 %v2381, %v2453
    %v2455 = vpop.f32.mrf.mxu0
    %v2456 = vadd.f32 %v2383, %v2455
    %v2457 = vpop.f32.mrf.mxu0
    %v2458 = vadd.f32 %v2385, %v2457
    %v2459 = vpop.f32.mrf.mxu0
    %v2460 = vadd.f32 %v2387, %v2459
    %2461 = vmatprep.mubr.bf16.mxu0 %v1929
    %2462 = vmatmul.mubr.bf16.gmra.mxu0 %v1928
    %v2463 = vpop.f32.mrf.mxu0
    %v2464 = vadd.f32 %v2391, %v2463
    %v2465 = vpop.f32.mrf.mxu0
    %v2466 = vadd.f32 %v2393, %v2465
    %v2467 = vpop.f32.mrf.mxu0
    %v2468 = vadd.f32 %v2395, %v2467
    %v2469 = vpop.f32.mrf.mxu0
    %v2470 = vadd.f32 %v2397, %v2469
    %2471 = vdwg.mxu0
    %v2472 = vmax.f32 %v2434, 0.0
    %v2473 = vmax.f32 %v2436, 0.0
    %v2474 = vmax.f32 %v2438, 0.0
    %v2475 = vmax.f32 %v2440, 0.0
    %v2476 = vmax.f32 %v2444, 0.0
    %v2477 = vmax.f32 %v2446, 0.0
    %v2478 = vmax.f32 %v2448, 0.0
    %v2479 = vmax.f32 %v2450, 0.0
    %v2480 = vmax.f32 %v2454, 0.0
    %v2481 = vmax.f32 %v2456, 0.0
    %v2482 = vmax.f32 %v2458, 0.0
    %v2483 = vmax.f32 %v2460, 0.0
    %v2484 = vmax.f32 %v2464, 0.0
    %v2485 = vmax.f32 %v2466, 0.0
    %v2486 = vmax.f32 %v2468, 0.0
    %v2487 = vmax.f32 %v2470, 0.0
    %v2488 = vpack.c.bf16 %v2474, %v2472
    %v2489 = vpack.c.bf16 %v2475, %v2473
    %v2490 = vpack.c.bf16 %v2478, %v2476
    %v2491 = vpack.c.bf16 %v2479, %v2477
    %v2492 = vpack.c.bf16 %v2482, %v2480
    %v2493 = vpack.c.bf16 %v2483, %v2481
    %v2494 = vpack.c.bf16 %v2486, %v2484
    %v2495 = vpack.c.bf16 %v2487, %v2485
    %v2496 = vld [vmem:[#allocation7] sm:$0xf]
    %v2497 = vld [vmem:[#allocation7 + $0x4] sm:$0xf]
    %v2498 = vld [vmem:[#allocation7 + $0x8] sm:$0xf]
    %v2499 = vld [vmem:[#allocation7 + $0xc] sm:$0xf]
    %v2500 = vld [vmem:[#allocation7 + $0x10] sm:$0xf]
    %v2501 = vld [vmem:[#allocation7 + $0x14] sm:$0xf]
    %v2502 = vld [vmem:[#allocation7 + $0x18] sm:$0xf]
    %v2503 = vld [vmem:[#allocation7 + $0x1c] sm:$0xf]
    %v2504 = vld [vmem:[#allocation7 + $0x20] sm:$0xf]
    %v2505 = vld [vmem:[#allocation7 + $0x24] sm:$0xf]
    %v2506 = vld [vmem:[#allocation7 + $0x28] sm:$0xf]
    %v2507 = vld [vmem:[#allocation7 + $0x2c] sm:$0xf]
    %v2508 = vld [vmem:[#allocation7 + $0x30] sm:$0xf]
    %v2509 = vld [vmem:[#allocation7 + $0x34] sm:$0xf]
    %v2510 = vld [vmem:[#allocation7 + $0x38] sm:$0xf]
    %v2511 = vld [vmem:[#allocation7 + $0x3c] sm:$0xf]
    %v2512 = vld [vmem:[#allocation7 + $0x40] sm:$0xf]
    %v2513 = vld [vmem:[#allocation7 + $0x44] sm:$0xf]
    %v2514 = vld [vmem:[#allocation7 + $0x48] sm:$0xf]
    %v2515 = vld [vmem:[#allocation7 + $0x4c] sm:$0xf]
    %v2516 = vld [vmem:[#allocation7 + $0x50] sm:$0xf]
    %v2517 = vld [vmem:[#allocation7 + $0x54] sm:$0xf]
    %v2518 = vld [vmem:[#allocation7 + $0x58] sm:$0xf]
    %v2519 = vld [vmem:[#allocation7 + $0x5c] sm:$0xf]
    %v2520 = vld [vmem:[#allocation7 + $0x60] sm:$0xf]
    %v2521 = vld [vmem:[#allocation7 + $0x64] sm:$0xf]
    %v2522 = vld [vmem:[#allocation7 + $0x68] sm:$0xf]
    %v2523 = vld [vmem:[#allocation7 + $0x6c] sm:$0xf]
    %v2524 = vld [vmem:[#allocation7 + $0x70] sm:$0xf]
    %v2525 = vld [vmem:[#allocation7 + $0x74] sm:$0xf]
    %v2526 = vld [vmem:[#allocation7 + $0x78] sm:$0xf]
    %v2527 = vld [vmem:[#allocation7 + $0x7c] sm:$0xf]
    %v2528 = vld [vmem:[%s8] sm:$0x1]
    %v2530 = vlaneseq
    %v2531 = vshrl.u32 %v2530, 7
    %v2532 = vsub.s32 0, %v2531
    %v2533 = vrot.slane %v2528, %v2532
    %v2567 = vunpack.c.l.b16 %v2496
    %v2568 = vunpack.c.l.b16 %v2497
    %v2569 = vunpack.c.l.b16 %v2498
    %v2570 = vunpack.c.l.b16 %v2499
    %v2571 = vunpack.c.l.b16 %v2500
    %v2572 = vunpack.c.l.b16 %v2501
    %v2573 = vunpack.c.l.b16 %v2502
    %v2574 = vunpack.c.l.b16 %v2503
    %v2575 = vunpack.c.l.b16 %v2504
    %v2576 = vunpack.c.l.b16 %v2505
    %v2577 = vunpack.c.l.b16 %v2506
    %v2578 = vunpack.c.l.b16 %v2507
    %v2579 = vunpack.c.l.b16 %v2508
    %v2580 = vunpack.c.l.b16 %v2509
    %v2581 = vunpack.c.l.b16 %v2510
    %v2582 = vunpack.c.l.b16 %v2511
    %v2583 = vunpack.c.l.b16 %v2512
    %v2584 = vunpack.c.l.b16 %v2513
    %v2585 = vunpack.c.l.b16 %v2514
    %v2586 = vunpack.c.l.b16 %v2515
    %v2587 = vunpack.c.l.b16 %v2516
    %v2588 = vunpack.c.l.b16 %v2517
    %v2589 = vunpack.c.l.b16 %v2518
    %v2590 = vunpack.c.l.b16 %v2519
    %v2591 = vunpack.c.l.b16 %v2520
    %v2592 = vunpack.c.l.b16 %v2521
    %v2593 = vunpack.c.l.b16 %v2522
    %v2594 = vunpack.c.l.b16 %v2523
    %v2595 = vunpack.c.l.b16 %v2524
    %v2596 = vunpack.c.l.b16 %v2525
    %v2597 = vunpack.c.l.b16 %v2526
    %v2598 = vunpack.c.l.b16 %v2527
    %v2599 = vpack.c.b16 %v2568, %v2567
    %v2600 = vpack.c.b16 %v2570, %v2569
    %v2601 = vpack.c.b16 %v2572, %v2571
    %v2602 = vpack.c.b16 %v2574, %v2573
    %v2603 = vpack.c.b16 %v2576, %v2575
    %v2604 = vpack.c.b16 %v2578, %v2577
    %v2605 = vpack.c.b16 %v2580, %v2579
    %v2606 = vpack.c.b16 %v2582, %v2581
    %v2607 = vpack.c.b16 %v2584, %v2583
    %v2608 = vpack.c.b16 %v2586, %v2585
    %v2609 = vpack.c.b16 %v2588, %v2587
    %v2610 = vpack.c.b16 %v2590, %v2589
    %v2611 = vpack.c.b16 %v2592, %v2591
    %v2612 = vpack.c.b16 %v2594, %v2593
    %v2613 = vpack.c.b16 %v2596, %v2595
    %v2614 = vpack.c.b16 %v2598, %v2597
    %2631 = vmatprep.subr.bf16.mxu0 0
    %2632 = vmatpush1.bf16.msra.mxu0 %v2606
    %2633 = vmatprep.subr.bf16.mxu0 0
    %2634 = vmatpush1.bf16.msra.mxu0 %v2605
    %2635 = vmatprep.subr.bf16.mxu0 0
    %2636 = vmatpush1.bf16.msra.mxu0 %v2604
    %2637 = vmatprep.subr.bf16.mxu0 0
    %2638 = vmatpush1.bf16.msra.mxu0 %v2603
    %2639 = vmatprep.subr.bf16.mxu0 0
    %2640 = vmatpush1.bf16.msra.mxu0 %v2602
    %2641 = vmatprep.subr.bf16.mxu0 0
    %2642 = vmatpush1.bf16.msra.mxu0 %v2601
    %2643 = vmatprep.subr.bf16.mxu0 0
    %2644 = vmatpush1.bf16.msra.mxu0 %v2600
    %2645 = vmatprep.subr.bf16.mxu0 0
    %2646 = vmatpush1.bf16.msra.mxu0 %v2599
    %2647 = vmatprep.subr.bf16.mxu0 0
    %2648 = vmatpush2.bf16.msra.mxu0 %v2614
    %2649 = vmatprep.subr.bf16.mxu0 0
    %2650 = vmatpush2.bf16.msra.mxu0 %v2613
    %2651 = vmatprep.subr.bf16.mxu0 0
    %2652 = vmatpush2.bf16.msra.mxu0 %v2612
    %2653 = vmatprep.subr.bf16.mxu0 0
    %2654 = vmatpush2.bf16.msra.mxu0 %v2611
    %2655 = vmatprep.subr.bf16.mxu0 0
    %2656 = vmatpush2.bf16.msra.mxu0 %v2610
    %2657 = vmatprep.subr.bf16.mxu0 0
    %2658 = vmatpush2.bf16.msra.mxu0 %v2609
    %2659 = vmatprep.subr.bf16.mxu0 0
    %2660 = vmatpush2.bf16.msra.mxu0 %v2608
    %2661 = vmatprep.subr.bf16.mxu0 0
    %2662 = vmatpush2.bf16.msra.mxu0 %v2607
    %2663 = vmatprep.mubr.bf16.mxu0 %v2489
    %2664 = vmatmul.mubr.bf16.gmra.mxu0 %v2488
    %v2665 = vpop.f32.mrf.mxu0
    %v2666 = vadd.f32 %v2533, %v2665
    %v2667 = vpop.f32.mrf.mxu0
    %v2668 = vpop.f32.mrf.mxu0
    %v2669 = vadd.f32 %v2533, %v2668
    %v2670 = vpop.f32.mrf.mxu0
    %2671 = vmatprep.mubr.bf16.mxu0 %v2491
    %2672 = vmatmul.mubr.bf16.gmra.mxu0 %v2490
    %v2673 = vpop.f32.mrf.mxu0
    %v2674 = vadd.f32 %v2533, %v2673
    %v2675 = vpop.f32.mrf.mxu0
    %v2676 = vpop.f32.mrf.mxu0
    %v2677 = vadd.f32 %v2533, %v2676
    %v2678 = vpop.f32.mrf.mxu0
    %2679 = vmatprep.mubr.bf16.mxu0 %v2493
    %2680 = vmatmul.mubr.bf16.gmra.mxu0 %v2492
    %v2681 = vpop.f32.mrf.mxu0
    %v2682 = vadd.f32 %v2533, %v2681
    %v2683 = vpop.f32.mrf.mxu0
    %v2684 = vpop.f32.mrf.mxu0
    %v2685 = vadd.f32 %v2533, %v2684
    %v2686 = vpop.f32.mrf.mxu0
    %2687 = vmatprep.mubr.bf16.mxu0 %v2495
    %2688 = vmatmul.mubr.bf16.gmra.mxu0 %v2494
    %v2689 = vpop.f32.mrf.mxu0
    %v2690 = vadd.f32 %v2533, %v2689
    %v2691 = vpop.f32.mrf.mxu0
    %v2692 = vpop.f32.mrf.mxu0
    %v2693 = vadd.f32 %v2533, %v2692
    %v2694 = vpop.f32.mrf.mxu0
    %2695 = vdwg.mxu0
    %2696 = vst [vmem:[#allocation8] sm:$0xff] %v2666
    %2697 = vst [vmem:[#allocation8 + $0x8] sm:$0xff] %v2669
    %2698 = vst [vmem:[#allocation8 + $0x10] sm:$0xff] %v2674
    %2699 = vst [vmem:[#allocation8 + $0x18] sm:$0xff] %v2677
    %2700 = vst [vmem:[#allocation8 + $0x20] sm:$0xff] %v2682
    %2701 = vst [vmem:[#allocation8 + $0x28] sm:$0xff] %v2685
    %2702 = vst [vmem:[#allocation8 + $0x30] sm:$0xff] %v2690
    %2703 = vst [vmem:[#allocation8 + $0x38] sm:$0xff] %v2693
    // Predicated region
    $region50: #{tpu_custom_call.1} parent=1 // pred_check
      _
    $region51: #{tpu_custom_call.1} parent=1 // pred_check_branch
      %2705 = sbr.rel (0) target = $region53
    $region52: #{tpu_custom_call.1} parent=1 // pred_region
      %s2707 = ssub.s32 1024, 1024
      %2708 = vsyncadd [#allocation4], %s2707
      %s2709 = sshll.u32 [#allocation8], 4
      %s2710 = int_to_ptr.vmem [resolvable:$true] %s2709
      %2715 = dma.vmem_to_hbm [thread:$0]  %s2710, 1024, %s9, [#allocation4], 128, 128, 8
    $region53: #{tpu_custom_call.1} parent=1 // pred_fallthru
      _
    // Predicated region
    $region54: #{tpu_custom_call.1} parent=1 // pred_check
      _
    $region55: #{tpu_custom_call.1} parent=1 // pred_check_branch
      %2717 = sbr.rel (0) target = $region57
    $region56: #{tpu_custom_call.1} parent=1 // pred_region
      %2718 = dma.done [#allocation4], 1024
    $region57: #{tpu_custom_call.1} parent=1 // pred_fallthru
      _
    %2719 = vsyncpa [#allocation3], 1
    %2720 = vsyncpa [#allocation6], 1
    %2721 = vsyncpa [#allocation4], 1

</llo_original>
